<compile_context>
chip_gen: v6e
topology: v6e:2x2x1
jax: 0.10.0
libtpu: 0.0.40
codegen_flags: <defaults>
</compile_context>

<pallas_src>
import jax
import jax.numpy as jnp
from jax import lax
from jax.experimental import pallas as pl
from jax.experimental.pallas import tpu as pltpu


# ----------------------------------------------------------------------------
# Weight preprocessing: express conv / deconv (1 channel, stride 1, VALID,
# no bias) as dense matrices acting on flattened images.  Weights-only work.
# ----------------------------------------------------------------------------
def _conv2d_as_matrix(k2d, h_in, w_in):
    """C such that flatten(conv2d(x, k2d)) == flatten(x) @ C."""
    kh, kw = k2d.shape
    h_out, w_out = h_in - kh + 1, w_in - kw + 1
    C = jnp.zeros((h_in * w_in, h_out * w_out), jnp.float32)
    oi = jnp.arange(h_out)[:, None]
    oj = jnp.arange(w_out)[None, :]
    out_idx = (oi * w_out + oj).reshape(-1)
    for a in range(kh):
        for b in range(kw):
            in_idx = ((oi + a) * w_in + (oj + b)).reshape(-1)
            C = C.at[in_idx, out_idx].add(k2d[a, b])
    return C


def _deconv2d_as_matrix(k2d, h_out, w_out):
    """D such that flatten(conv_transpose2d(z, k2d)) == flatten(z) @ D."""
    kh, kw = k2d.shape
    h_in, w_in = h_out + kh - 1, w_out + kw - 1
    D = jnp.zeros((h_out * w_out, h_in * w_in), jnp.float32)
    zi = jnp.arange(h_out)[:, None]
    zj = jnp.arange(w_out)[None, :]
    z_idx = (zi * w_out + zj).reshape(-1)
    for a in range(kh):
        for b in range(kw):
            o_idx = ((zi + a) * w_in + (zj + b)).reshape(-1)
            D = D.at[z_idx, o_idx].add(k2d[a, b])
    return D


# ----------------------------------------------------------------------------
# Pallas kernel: one grid step = (batch shard b, time chunk i).
# ----------------------------------------------------------------------------
def _conv_rnn_kernel(x_ref, h0_ref, w_in_ref, b_ref, whh_ref, wout_ref, d_ref,
                     out_ref, z_ref, h_carry_ref, work_ref):
    """Block shapes:
      x_ref    : (Nb, Tc, HWin)   flattened input frames, batch-major
      h0_ref   : (Nb, H)
      w_in_ref : (HWin, H)        conv folded into W_ih^T
      b_ref    : (1, H)           b_ih + b_hh
      whh_ref  : (H, H)           W_hh^T (pre-transposed)
      wout_ref : (H, Ppad)        readout weight^T, zero-padded to 128-mult lanes
      d_ref    : (Ppad, HWin)     deconv matrix (zero rows for the padding)
      out_ref  : (Nb, Tc, HWin)
      z_ref    : (Nb, Tc, Ppad)
      h_carry_ref : (Nb, H)       persistent hidden state across time chunks
      work_ref    : (Nb, Tc, H)   chunk scratch (input projection, then h_t)
    """
    nb, tc, _ = work_ref.shape

    # Start of a batch shard's time sweep -> (re)load the initial hidden state.
    @pl.when(pl.program_id(1) == 0)
    def _():
        h_carry_ref[...] = h0_ref[...]

    # (1) Input projection hoisted out of the recurrence: per batch row one
    #     full-sublane (Tc, HWin) x (HWin, H) MXU matmul (nb is tiny & static).
    for n in range(nb):
        work_ref[n] = (
            jnp.dot(x_ref[n], w_in_ref[...], preferred_element_type=jnp.float32)
            + b_ref[...])

    # (2) Serial recurrence (latency-bound): minimal per-step body, bounded
    #     unroll for LLO visibility without exploding code size.
    def step(t, h):                                   # h: (Nb, H)
        inp = jnp.concatenate(
            [work_ref[n, pl.ds(t, 1), :] for n in range(nb)], axis=0)
        h_new = jnp.tanh(
            inp + jnp.dot(h, whh_ref[...], preferred_element_type=jnp.float32))
        for n in range(nb):
            work_ref[n, pl.ds(t, 1), :] = h_new[n:n + 1, :]
        return h_new

    h_carry_ref[...] = lax.fori_loop(0, tc, step, h_carry_ref[...],
                                     unroll=min(tc, 8))

    # (3) Readout + deconv for the whole chunk: full-sublane matmuls with
    #     lane-dense (128-multiple) output stores.
    for n in range(nb):
        z_n = jax.nn.sigmoid(
            jnp.dot(work_ref[n], wout_ref[...],
                    preferred_element_type=jnp.float32))          # (Tc, Ppad)
        z_ref[n] = z_n
        out_ref[n] = jnp.dot(z_n, d_ref[...],
                             preferred_element_type=jnp.float32)   # (Tc, HWin)


# ----------------------------------------------------------------------------
# Time-chunk selection from a VMEM budget (double-buffered streaming slabs +
# scratch + weight blocks).
# ----------------------------------------------------------------------------
def _choose_time_chunk(T, nb, HWin, H, Ppad, budget_bytes):
    def footprint(tc):
        f = 4  # f32
        stream = 2 * nb * tc * (2 * HWin + Ppad) * f       # x, out, z (x2 buffers)
        work = nb * tc * H * f                             # work scratch
        const = 2 * (HWin * H + H + H * H + H * Ppad + Ppad * HWin + nb * H) * f
        return stream + work + const + nb * H * f
    # Tc must divide T and be a multiple of 8 (or equal T).
    cands = sorted({d for d in range(8, T + 1, 8) if T % d == 0} | {T})
    best = cands[0]
    for c in cands:
        if footprint(c) <= budget_bytes:
            best = c
    return best


# ----------------------------------------------------------------------------
# Wrapper: PyTorch-convention in/out, weight prep, pallas_call.
# ----------------------------------------------------------------------------
def conv_rnn_forward(x, h0, params, *, time_chunk=None, batch_shards=1,
                     vmem_budget_bytes=36 * 2**20):
    """x: (N, 1, T, H_in, W_in), h0: (1, N, hidden).
    Returns (out, z): out (N, 1, T, H_in, W_in), z (N, T, H_out*W_out)."""
    N, Ch, T, H_in, W_in = x.shape
    assert Ch == 1
    kh, kw = params["conv_w"].shape[-2:]
    H_out, W_out = H_in - kh + 1, W_in - kw + 1
    P = H_out * W_out
    Ppad = ((P + 127) // 128) * 128          # lane-dense readout / deconv dim
    HWin = H_in * W_in
    H = params["w_hh"].shape[0]

    assert N % batch_shards == 0
    Nb = N // batch_shards
    if batch_shards > 1:
        # (8,128) rule on the (Nb, H) h0 block when it is not the full array.
        assert Nb % 8 == 0, "batch_shards > 1 requires (N // batch_shards) % 8 == 0"

    if time_chunk is None:
        Tc = _choose_time_chunk(T, Nb, HWin, H, Ppad, vmem_budget_bytes)
    else:
        Tc = int(time_chunk)
        assert T % Tc == 0 and (Tc % 8 == 0 or Tc == T), \
            "time_chunk must divide T and be a multiple of 8 (or equal T)"

    # ---- one-time weight preprocessing (weights only, no data touched) ----
    C = _conv2d_as_matrix(params["conv_w"][0, 0].astype(jnp.float32), H_in, W_in)
    D = _deconv2d_as_matrix(params["deconv_w"][0, 0].astype(jnp.float32),
                            H_out, W_out)                         # (P, HWin)
    D_pad = jnp.zeros((Ppad, HWin), jnp.float32).at[:P, :].set(D)
    w_in_eff = C @ params["w_ih"].astype(jnp.float32).T           # (HWin, H)
    bias = (params["b_ih"] + params["b_hh"]).astype(jnp.float32).reshape(1, H)
    whh_t = params["w_hh"].astype(jnp.float32).T                  # (H, H)
    wout_pad = jnp.zeros((H, Ppad), jnp.float32).at[:, :P].set(
        params["w_out"].astype(jnp.float32).T)                    # (H, Ppad)

    # ---- data: only free reshapes, no transposes ----
    x_flat = x.reshape(N, T, HWin).astype(jnp.float32)            # (N, T, HWin)
    h0_2d = h0.reshape(N, H).astype(jnp.float32)                  # (N, H)

    grid = (batch_shards, T // Tc)

    out_flat, z_pad = pl.pallas_call(
        _conv_rnn_kernel,
        out_shape=(jax.ShapeDtypeStruct((N, T, HWin), jnp.float32),
                   jax.ShapeDtypeStruct((N, T, Ppad), jnp.float32)),
        grid_spec=pltpu.PrefetchScalarGridSpec(
            num_scalar_prefetch=0,
            grid=grid,
            in_specs=[
                pl.BlockSpec((Nb, Tc, HWin), lambda b, i: (b, i, 0)),  # x chunk
                pl.BlockSpec((Nb, H),        lambda b, i: (b, 0)),     # h0 shard
                pl.BlockSpec((HWin, H),      lambda b, i: (0, 0)),     # conv∘W_ih^T
                pl.BlockSpec((1, H),         lambda b, i: (0, 0)),     # b_ih + b_hh
                pl.BlockSpec((H, H),         lambda b, i: (0, 0)),     # W_hh^T
                pl.BlockSpec((H, Ppad),      lambda b, i: (0, 0)),     # W_out^T (padded)
                pl.BlockSpec((Ppad, HWin),   lambda b, i: (0, 0)),     # deconv matrix
            ],
            out_specs=[
                pl.BlockSpec((Nb, Tc, HWin), lambda b, i: (b, i, 0)),  # out chunk
                pl.BlockSpec((Nb, Tc, Ppad), lambda b, i: (b, i, 0)),  # z chunk
            ],
            scratch_shapes=[
                pltpu.VMEM((Nb, H), jnp.float32),       # persistent hidden carry
                pltpu.VMEM((Nb, Tc, H), jnp.float32),   # chunk work buffer
            ],
        ),
        compiler_params=pltpu.CompilerParams(
            # Batch shards are independent (megacore on v7x); the time axis
            # carries the recurrence and must stay serial.
            dimension_semantics=("parallel", "arbitrary"),
            vmem_limit_bytes=48 * 2**20),
    )(x_flat, h0_2d, w_in_eff, bias, whh_t, wout_pad, D_pad)

    z = z_pad[:, :, :P]                                           # (N, T, P)
    out = out_flat.reshape(N, 1, T, H_in, W_in)
    return out, z


# ----------------------------------------------------------------------------
# Pure-JAX reference (mirrors the PyTorch module) for correctness checking.
# ----------------------------------------------------------------------------
def _ref_conv(x_img, k2d):  # x_img: (N, H_in, W_in)
    n, hi, wi = x_img.shape
    kh, kw = k2d.shape
    ho, wo = hi - kh + 1, wi - kw + 1
    out = jnp.zeros((n, ho, wo), jnp.float32)
    for a in range(kh):
        for b in range(kw):
            out = out + k2d[a, b] * x_img[:, a:a + ho, b:b + wo]
    return out


def _ref_deconv(z_img, k2d):  # z_img: (N, H_out, W_out)
    n, ho, wo = z_img.shape
    kh, kw = k2d.shape
    out = jnp.zeros((n, ho + kh - 1, wo + kw - 1), jnp.float32)
    for a in range(kh):
        for b in range(kw):
            out = out.at[:, a:a + ho, b:b + wo].add(k2d[a, b] * z_img)
    return out


def _ref_forward(x, h0, params):
    N, _, T, Hi, Wi = x.shape
    kh, kw = params["conv_w"].shape[-2:]
    Ho, Wo = Hi - kh + 1, Wi - kw + 1
    kc = params["conv_w"][0, 0]
    kd = params["deconv_w"][0, 0]

    x_conv_vec = jnp.stack(
        [_ref_conv(x[:, 0, t], kc).reshape(N, -1) for t in range(T)], axis=1)

    def step(h, xt):
        h_new = jnp.tanh(xt @ params["w_ih"].T + params["b_ih"]
                         + h @ params["w_hh"].T + params["b_hh"])
        return h_new, h_new

    _, hs = lax.scan(step, h0[0], jnp.transpose(x_conv_vec, (1, 0, 2)))  # (T,N,H)
    z = jax.nn.sigmoid(jnp.einsum('tnh,ph->tnp', hs, params["w_out"]))
    z_bt = jnp.transpose(z, (1, 0, 2))                                   # (N,T,P)
    out = jnp.stack(
        [_ref_deconv(z_bt[:, t].reshape(N, Ho, Wo), kd) for t in range(T)],
        axis=1)[:, None]                                                 # (N,1,T,Hi,Wi)
    return out, z_bt


# ----------------------------------------------------------------------------
if __name__ == "__main__":
    # Small shapes consistent with the module (T=16 so the hidden-state carry
    # across time chunks is exercised with time_chunk=8).
    N, T, H_in, W_in, ksz, hidden = 2, 16, 16, 16, 3, 32
    H_out, W_out = H_in - ksz + 1, W_in - ksz + 1
    P = H_out * W_out

    root = jax.random.PRNGKey(0)
    kc, kd, k1, k2, k3, k4, k5, kx, kh = jax.random.split(root, 9)

    def u(k, shape, bound):
        return jax.random.uniform(k, shape, jnp.float32, -bound, bound)

    params = {
        "conv_w":   u(kc, (1, 1, ksz, ksz), 1.0 / ksz),            # Conv2d, no bias
        "deconv_w": u(kd, (1, 1, ksz, ksz), 1.0 / ksz),            # ConvTranspose2d, no bias
        "w_ih":     u(k1, (hidden, P), hidden ** -0.5),            # nn.RNN weight_ih_l0
        "w_hh":     u(k2, (hidden, hidden), hidden ** -0.5),       # nn.RNN weight_hh_l0
        "b_ih":     u(k3, (hidden,), hidden ** -0.5),              # nn.RNN bias_ih_l0
        "b_hh":     u(k4, (hidden,), hidden ** -0.5),              # nn.RNN bias_hh_l0
        "w_out":    u(k5, (P, hidden), hidden ** -0.5),            # Linear(hidden, P, bias=None)
    }

    # Input "normalized between 0 and 1".
    x = jax.random.uniform(kx, (N, 1, T, H_in, W_in), jnp.float32)
    h0 = 0.1 * jax.random.normal(kh, (1, N, hidden), jnp.float32)

    out, z = conv_rnn_forward(x, h0, params, time_chunk=8)
    jax.block_until_ready((out, z))

    assert out.shape == (N, 1, T, H_in, W_in)
    assert z.shape == (N, T, P)
    assert bool(jnp.all(jnp.isfinite(out))) and bool(jnp.all(jnp.isfinite(z)))

    out_ref, z_ref = _ref_forward(x, h0, params)
    err_out = float(jnp.max(jnp.abs(out - out_ref)))
    err_z = float(jnp.max(jnp.abs(z - z_ref)))
    assert err_out < 1e-3 and err_z < 1e-3, (err_out, err_z)

    print("KERNEL_OK")
</pallas_src>

<mosaic_0001>
module attributes {stable_mosaic.version = 11 : i64} {
  func.func @_conv_rnn_kernel(%arg0: i32, %arg1: i32, %arg2: memref<2x8x256xf32, #tpu.memory_space<vmem>>, %arg3: memref<2x32xf32, #tpu.memory_space<vmem>>, %arg4: memref<256x32xf32, #tpu.memory_space<vmem>>, %arg5: memref<1x32xf32, #tpu.memory_space<vmem>>, %arg6: memref<32x32xf32, #tpu.memory_space<vmem>>, %arg7: memref<32x256xf32, #tpu.memory_space<vmem>>, %arg8: memref<256x256xf32, #tpu.memory_space<vmem>>, %arg9: memref<2x8x256xf32, #tpu.memory_space<vmem>>, %arg10: memref<2x8x256xf32, #tpu.memory_space<vmem>>, %arg11: memref<2x32xf32, #tpu.memory_space<vmem>>, %arg12: memref<2x8x32xf32, #tpu.memory_space<vmem>>) attributes {dimension_semantics = [#tpu.dimension_semantics<parallel>, #tpu.dimension_semantics<arbitrary>], iteration_bounds = array<i64: 1, 2>, scalar_prefetch = 0 : i64, scratch_operands = 2 : i64, tpu.core_type = #tpu.core_type<tc>, window_params = [{transform_indices = @transform_0, window_bounds = array<i64: 2, 8, 256>}, {transform_indices = @transform_1, window_bounds = array<i64: 2, 32>}, {pipeline_mode = #tpu.pipeline_mode<synchronous>, transform_indices = @transform_2, window_bounds = array<i64: 256, 32>}, {pipeline_mode = #tpu.pipeline_mode<synchronous>, transform_indices = @transform_3, window_bounds = array<i64: 1, 32>}, {pipeline_mode = #tpu.pipeline_mode<synchronous>, transform_indices = @transform_4, window_bounds = array<i64: 32, 32>}, {pipeline_mode = #tpu.pipeline_mode<synchronous>, transform_indices = @transform_5, window_bounds = array<i64: 32, 256>}, {pipeline_mode = #tpu.pipeline_mode<synchronous>, transform_indices = @transform_6, window_bounds = array<i64: 256, 256>}, {transform_indices = @transform_7, window_bounds = array<i64: 2, 8, 256>}, {transform_indices = @transform_8, window_bounds = array<i64: 2, 8, 256>}]} {
    %c0_i32 = arith.constant 0 : i32
    %0 = arith.cmpi eq, %arg1, %c0_i32 : i32
    %1 = arith.extui %0 : i1 to i32
    %c0_i32_0 = arith.constant 0 : i32
    %2 = arith.cmpi ne, %1, %c0_i32_0 : i32
    scf.if %2 {
      %c0_145 = arith.constant 0 : index
      %c0_146 = arith.constant 0 : index
      %227 = vector.load %arg3[%c0_145, %c0_146] : memref<2x32xf32, #tpu.memory_space<vmem>>, vector<2x32xf32>
      %c0_147 = arith.constant 0 : index
      %c0_148 = arith.constant 0 : index
      %228 = vector.load %arg11[%c0_147, %c0_148] : memref<2x32xf32, #tpu.memory_space<vmem>>, vector<2x32xf32>
      tpu.vector_store %arg11[%c0_147, %c0_148], %227 {strides = array<i32>} : memref<2x32xf32, #tpu.memory_space<vmem>>, vector<2x32xf32>,
    } else {
    }
    %c0 = arith.constant 0 : index
    %c0_1 = arith.constant 0 : index
    %c0_2 = arith.constant 0 : index
    %3 = vector.load %arg2[%c0, %c0_1, %c0_2] : memref<2x8x256xf32, #tpu.memory_space<vmem>>, vector<1x8x256xf32>
    %4 = vector.shape_cast %3 : vector<1x8x256xf32> to vector<8x256xf32>
    %c0_3 = arith.constant 0 : index
    %c0_4 = arith.constant 0 : index
    %5 = vector.load %arg4[%c0_3, %c0_4] : memref<256x32xf32, #tpu.memory_space<vmem>>, vector<256x32xf32>
    %cst = arith.constant dense<0.000000e+00> : vector<8x32xf32>
    %6 = tpu.matmul %4, %5, %cst {dimension_numbers = #tpu.dot_dimension_numbers<[1], [0], [0], [1], [0, 0, 1, 1], [], []>} : vector<8x256xf32>, vector<256x32xf32>, vector<8x32xf32> -> vector<8x32xf32>
    %c0_5 = arith.constant 0 : index
    %c0_6 = arith.constant 0 : index
    %7 = vector.load %arg5[%c0_5, %c0_6] : memref<1x32xf32, #tpu.memory_space<vmem>>, vector<1x32xf32>
    %8 = vector.broadcast %7 : vector<1x32xf32> to vector<8x32xf32>
    %9 = arith.addf %6, %8 : vector<8x32xf32>
    %c0_7 = arith.constant 0 : index
    %c0_8 = arith.constant 0 : index
    %c0_9 = arith.constant 0 : index
    %10 = vector.load %arg12[%c0_7, %c0_8, %c0_9] : memref<2x8x32xf32, #tpu.memory_space<vmem>>, vector<1x8x32xf32>
    %11 = vector.shape_cast %10 : vector<1x8x32xf32> to vector<8x32xf32>
    %12 = vector.shape_cast %9 : vector<8x32xf32> to vector<1x8x32xf32>
    tpu.vector_store %arg12[%c0_7, %c0_8, %c0_9], %12 {strides = array<i32>} : memref<2x8x32xf32, #tpu.memory_space<vmem>>, vector<1x8x32xf32>,
    %c1 = arith.constant 1 : index
    %c0_10 = arith.constant 0 : index
    %c0_11 = arith.constant 0 : index
    %13 = vector.load %arg2[%c1, %c0_10, %c0_11] : memref<2x8x256xf32, #tpu.memory_space<vmem>>, vector<1x8x256xf32>
    %14 = vector.shape_cast %13 : vector<1x8x256xf32> to vector<8x256xf32>
    %c0_12 = arith.constant 0 : index
    %c0_13 = arith.constant 0 : index
    %15 = vector.load %arg4[%c0_12, %c0_13] : memref<256x32xf32, #tpu.memory_space<vmem>>, vector<256x32xf32>
    %cst_14 = arith.constant dense<0.000000e+00> : vector<8x32xf32>
    %16 = tpu.matmul %14, %15, %cst_14 {dimension_numbers = #tpu.dot_dimension_numbers<[1], [0], [0], [1], [0, 0, 1, 1], [], []>} : vector<8x256xf32>, vector<256x32xf32>, vector<8x32xf32> -> vector<8x32xf32>
    %c0_15 = arith.constant 0 : index
    %c0_16 = arith.constant 0 : index
    %17 = vector.load %arg5[%c0_15, %c0_16] : memref<1x32xf32, #tpu.memory_space<vmem>>, vector<1x32xf32>
    %18 = vector.broadcast %17 : vector<1x32xf32> to vector<8x32xf32>
    %19 = arith.addf %16, %18 : vector<8x32xf32>
    %c1_17 = arith.constant 1 : index
    %c0_18 = arith.constant 0 : index
    %c0_19 = arith.constant 0 : index
    %20 = vector.load %arg12[%c1_17, %c0_18, %c0_19] : memref<2x8x32xf32, #tpu.memory_space<vmem>>, vector<1x8x32xf32>
    %21 = vector.shape_cast %20 : vector<1x8x32xf32> to vector<8x32xf32>
    %22 = vector.shape_cast %19 : vector<8x32xf32> to vector<1x8x32xf32>
    tpu.vector_store %arg12[%c1_17, %c0_18, %c0_19], %22 {strides = array<i32>} : memref<2x8x32xf32, #tpu.memory_space<vmem>>, vector<1x8x32xf32>,
    %c0_20 = arith.constant 0 : index
    %c0_21 = arith.constant 0 : index
    %23 = vector.load %arg11[%c0_20, %c0_21] : memref<2x32xf32, #tpu.memory_space<vmem>>, vector<2x32xf32>
    %c0_i32_22 = arith.constant 0 : i32
    %c0_23 = arith.constant 0 : index
    %24 = arith.index_cast %c0_i32_22 : i32 to index
    %c0_24 = arith.constant 0 : index
    %25 = vector.load %arg12[%c0_23, %24, %c0_24] : memref<2x8x32xf32, #tpu.memory_space<vmem>>, vector<1x1x32xf32>
    %26 = vector.shape_cast %25 : vector<1x1x32xf32> to vector<1x32xf32>
    %c1_25 = arith.constant 1 : index
    %27 = arith.index_cast %c0_i32_22 : i32 to index
    %c0_26 = arith.constant 0 : index
    %28 = vector.load %arg12[%c1_25, %27, %c0_26] : memref<2x8x32xf32, #tpu.memory_space<vmem>>, vector<1x1x32xf32>
    %29 = vector.shape_cast %28 : vector<1x1x32xf32> to vector<1x32xf32>
    %30 = tpu.concatenate %26, %29 in 0 : vector<1x32xf32>, vector<1x32xf32> -> vector<2x32xf32>
    %c0_27 = arith.constant 0 : index
    %c0_28 = arith.constant 0 : index
    %31 = vector.load %arg6[%c0_27, %c0_28] : memref<32x32xf32, #tpu.memory_space<vmem>>, vector<32x32xf32>
    %cst_29 = arith.constant dense<0.000000e+00> : vector<2x32xf32>
    %32 = tpu.matmul %23, %31, %cst_29 {dimension_numbers = #tpu.dot_dimension_numbers<[1], [0], [0], [1], [0, 0, 1, 1], [], []>} : vector<2x32xf32>, vector<32x32xf32>, vector<2x32xf32> -> vector<2x32xf32>
    %33 = arith.addf %30, %32 : vector<2x32xf32>
    %34 = math.tanh %33 : vector<2x32xf32>
    %35 = vector.extract_strided_slice %34 {offsets = [0, 0], sizes = [1, 32], strides = [1, 1]} : vector<2x32xf32> to vector<1x32xf32>
    %c0_30 = arith.constant 0 : index
    %36 = arith.index_cast %c0_i32_22 : i32 to index
    %c0_31 = arith.constant 0 : index
    %37 = vector.load %arg12[%c0_30, %36, %c0_31] : memref<2x8x32xf32, #tpu.memory_space<vmem>>, vector<1x1x32xf32>
    %38 = vector.shape_cast %37 : vector<1x1x32xf32> to vector<1x32xf32>
    %39 = vector.shape_cast %35 : vector<1x32xf32> to vector<1x1x32xf32>
    tpu.vector_store %arg12[%c0_30, %36, %c0_31], %39 {strides = array<i32>} : memref<2x8x32xf32, #tpu.memory_space<vmem>>, vector<1x1x32xf32>,
    %40 = vector.extract_strided_slice %34 {offsets = [1, 0], sizes = [1, 32], strides = [1, 1]} : vector<2x32xf32> to vector<1x32xf32>
    %c1_32 = arith.constant 1 : index
    %41 = arith.index_cast %c0_i32_22 : i32 to index
    %c0_33 = arith.constant 0 : index
    %42 = vector.load %arg12[%c1_32, %41, %c0_33] : memref<2x8x32xf32, #tpu.memory_space<vmem>>, vector<1x1x32xf32>
    %43 = vector.shape_cast %42 : vector<1x1x32xf32> to vector<1x32xf32>
    %44 = vector.shape_cast %40 : vector<1x32xf32> to vector<1x1x32xf32>
    tpu.vector_store %arg12[%c1_32, %41, %c0_33], %44 {strides = array<i32>} : memref<2x8x32xf32, #tpu.memory_space<vmem>>, vector<1x1x32xf32>,
    %c1_i32 = arith.constant 1 : i32
    %c0_34 = arith.constant 0 : index
    %45 = arith.index_cast %c1_i32 : i32 to index
    %c0_35 = arith.constant 0 : index
    %46 = vector.load %arg12[%c0_34, %45, %c0_35] : memref<2x8x32xf32, #tpu.memory_space<vmem>>, vector<1x1x32xf32>
    %47 = vector.shape_cast %46 : vector<1x1x32xf32> to vector<1x32xf32>
    %c1_36 = arith.constant 1 : index
    %48 = arith.index_cast %c1_i32 : i32 to index
    %c0_37 = arith.constant 0 : index
    %49 = vector.load %arg12[%c1_36, %48, %c0_37] : memref<2x8x32xf32, #tpu.memory_space<vmem>>, vector<1x1x32xf32>
    %50 = vector.shape_cast %49 : vector<1x1x32xf32> to vector<1x32xf32>
    %51 = tpu.concatenate %47, %50 in 0 : vector<1x32xf32>, vector<1x32xf32> -> vector<2x32xf32>
    %c0_38 = arith.constant 0 : index
    %c0_39 = arith.constant 0 : index
    %52 = vector.load %arg6[%c0_38, %c0_39] : memref<32x32xf32, #tpu.memory_space<vmem>>, vector<32x32xf32>
    %cst_40 = arith.constant dense<0.000000e+00> : vector<2x32xf32>
    %53 = tpu.matmul %34, %52, %cst_40 {dimension_numbers = #tpu.dot_dimension_numbers<[1], [0], [0], [1], [0, 0, 1, 1], [], []>} : vector<2x32xf32>, vector<32x32xf32>, vector<2x32xf32> -> vector<2x32xf32>
    %54 = arith.addf %51, %53 : vector<2x32xf32>
    %55 = math.tanh %54 : vector<2x32xf32>
    %56 = vector.extract_strided_slice %55 {offsets = [0, 0], sizes = [1, 32], strides = [1, 1]} : vector<2x32xf32> to vector<1x32xf32>
    %c0_41 = arith.constant 0 : index
    %57 = arith.index_cast %c1_i32 : i32 to index
    %c0_42 = arith.constant 0 : index
    %58 = vector.load %arg12[%c0_41, %57, %c0_42] : memref<2x8x32xf32, #tpu.memory_space<vmem>>, vector<1x1x32xf32>
    %59 = vector.shape_cast %58 : vector<1x1x32xf32> to vector<1x32xf32>
    %60 = vector.shape_cast %56 : vector<1x32xf32> to vector<1x1x32xf32>
    tpu.vector_store %arg12[%c0_41, %57, %c0_42], %60 {strides = array<i32>} : memref<2x8x32xf32, #tpu.memory_space<vmem>>, vector<1x1x32xf32>,
    %61 = vector.extract_strided_slice %55 {offsets = [1, 0], sizes = [1, 32], strides = [1, 1]} : vector<2x32xf32> to vector<1x32xf32>
    %c1_43 = arith.constant 1 : index
    %62 = arith.index_cast %c1_i32 : i32 to index
    %c0_44 = arith.constant 0 : index
    %63 = vector.load %arg12[%c1_43, %62, %c0_44] : memref<2x8x32xf32, #tpu.memory_space<vmem>>, vector<1x1x32xf32>
    %64 = vector.shape_cast %63 : vector<1x1x32xf32> to vector<1x32xf32>
    %65 = vector.shape_cast %61 : vector<1x32xf32> to vector<1x1x32xf32>
    tpu.vector_store %arg12[%c1_43, %62, %c0_44], %65 {strides = array<i32>} : memref<2x8x32xf32, #tpu.memory_space<vmem>>, vector<1x1x32xf32>,
    %c2_i32 = arith.constant 2 : i32
    %c0_45 = arith.constant 0 : index
    %66 = arith.index_cast %c2_i32 : i32 to index
    %c0_46 = arith.constant 0 : index
    %67 = vector.load %arg12[%c0_45, %66, %c0_46] : memref<2x8x32xf32, #tpu.memory_space<vmem>>, vector<1x1x32xf32>
    %68 = vector.shape_cast %67 : vector<1x1x32xf32> to vector<1x32xf32>
    %c1_47 = arith.constant 1 : index
    %69 = arith.index_cast %c2_i32 : i32 to index
    %c0_48 = arith.constant 0 : index
    %70 = vector.load %arg12[%c1_47, %69, %c0_48] : memref<2x8x32xf32, #tpu.memory_space<vmem>>, vector<1x1x32xf32>
    %71 = vector.shape_cast %70 : vector<1x1x32xf32> to vector<1x32xf32>
    %72 = tpu.concatenate %68, %71 in 0 : vector<1x32xf32>, vector<1x32xf32> -> vector<2x32xf32>
    %c0_49 = arith.constant 0 : index
    %c0_50 = arith.constant 0 : index
    %73 = vector.load %arg6[%c0_49, %c0_50] : memref<32x32xf32, #tpu.memory_space<vmem>>, vector<32x32xf32>
    %cst_51 = arith.constant dense<0.000000e+00> : vector<2x32xf32>
    %74 = tpu.matmul %55, %73, %cst_51 {dimension_numbers = #tpu.dot_dimension_numbers<[1], [0], [0], [1], [0, 0, 1, 1], [], []>} : vector<2x32xf32>, vector<32x32xf32>, vector<2x32xf32> -> vector<2x32xf32>
    %75 = arith.addf %72, %74 : vector<2x32xf32>
    %76 = math.tanh %75 : vector<2x32xf32>
    %77 = vector.extract_strided_slice %76 {offsets = [0, 0], sizes = [1, 32], strides = [1, 1]} : vector<2x32xf32> to vector<1x32xf32>
    %c0_52 = arith.constant 0 : index
    %78 = arith.index_cast %c2_i32 : i32 to index
    %c0_53 = arith.constant 0 : index
    %79 = vector.load %arg12[%c0_52, %78, %c0_53] : memref<2x8x32xf32, #tpu.memory_space<vmem>>, vector<1x1x32xf32>
    %80 = vector.shape_cast %79 : vector<1x1x32xf32> to vector<1x32xf32>
    %81 = vector.shape_cast %77 : vector<1x32xf32> to vector<1x1x32xf32>
    tpu.vector_store %arg12[%c0_52, %78, %c0_53], %81 {strides = array<i32>} : memref<2x8x32xf32, #tpu.memory_space<vmem>>, vector<1x1x32xf32>,
    %82 = vector.extract_strided_slice %76 {offsets = [1, 0], sizes = [1, 32], strides = [1, 1]} : vector<2x32xf32> to vector<1x32xf32>
    %c1_54 = arith.constant 1 : index
    %83 = arith.index_cast %c2_i32 : i32 to index
    %c0_55 = arith.constant 0 : index
    %84 = vector.load %arg12[%c1_54, %83, %c0_55] : memref<2x8x32xf32, #tpu.memory_space<vmem>>, vector<1x1x32xf32>
    %85 = vector.shape_cast %84 : vector<1x1x32xf32> to vector<1x32xf32>
    %86 = vector.shape_cast %82 : vector<1x32xf32> to vector<1x1x32xf32>
    tpu.vector_store %arg12[%c1_54, %83, %c0_55], %86 {strides = array<i32>} : memref<2x8x32xf32, #tpu.memory_space<vmem>>, vector<1x1x32xf32>,
    %c3_i32 = arith.constant 3 : i32
    %c0_56 = arith.constant 0 : index
    %87 = arith.index_cast %c3_i32 : i32 to index
    %c0_57 = arith.constant 0 : index
    %88 = vector.load %arg12[%c0_56, %87, %c0_57] : memref<2x8x32xf32, #tpu.memory_space<vmem>>, vector<1x1x32xf32>
    %89 = vector.shape_cast %88 : vector<1x1x32xf32> to vector<1x32xf32>
    %c1_58 = arith.constant 1 : index
    %90 = arith.index_cast %c3_i32 : i32 to index
    %c0_59 = arith.constant 0 : index
    %91 = vector.load %arg12[%c1_58, %90, %c0_59] : memref<2x8x32xf32, #tpu.memory_space<vmem>>, vector<1x1x32xf32>
    %92 = vector.shape_cast %91 : vector<1x1x32xf32> to vector<1x32xf32>
    %93 = tpu.concatenate %89, %92 in 0 : vector<1x32xf32>, vector<1x32xf32> -> vector<2x32xf32>
    %c0_60 = arith.constant 0 : index
    %c0_61 = arith.constant 0 : index
    %94 = vector.load %arg6[%c0_60, %c0_61] : memref<32x32xf32, #tpu.memory_space<vmem>>, vector<32x32xf32>
    %cst_62 = arith.constant dense<0.000000e+00> : vector<2x32xf32>
    %95 = tpu.matmul %76, %94, %cst_62 {dimension_numbers = #tpu.dot_dimension_numbers<[1], [0], [0], [1], [0, 0, 1, 1], [], []>} : vector<2x32xf32>, vector<32x32xf32>, vector<2x32xf32> -> vector<2x32xf32>
    %96 = arith.addf %93, %95 : vector<2x32xf32>
    %97 = math.tanh %96 : vector<2x32xf32>
    %98 = vector.extract_strided_slice %97 {offsets = [0, 0], sizes = [1, 32], strides = [1, 1]} : vector<2x32xf32> to vector<1x32xf32>
    %c0_63 = arith.constant 0 : index
    %99 = arith.index_cast %c3_i32 : i32 to index
    %c0_64 = arith.constant 0 : index
    %100 = vector.load %arg12[%c0_63, %99, %c0_64] : memref<2x8x32xf32, #tpu.memory_space<vmem>>, vector<1x1x32xf32>
    %101 = vector.shape_cast %100 : vector<1x1x32xf32> to vector<1x32xf32>
    %102 = vector.shape_cast %98 : vector<1x32xf32> to vector<1x1x32xf32>
    tpu.vector_store %arg12[%c0_63, %99, %c0_64], %102 {strides = array<i32>} : memref<2x8x32xf32, #tpu.memory_space<vmem>>, vector<1x1x32xf32>,
    %103 = vector.extract_strided_slice %97 {offsets = [1, 0], sizes = [1, 32], strides = [1, 1]} : vector<2x32xf32> to vector<1x32xf32>
    %c1_65 = arith.constant 1 : index
    %104 = arith.index_cast %c3_i32 : i32 to index
    %c0_66 = arith.constant 0 : index
    %105 = vector.load %arg12[%c1_65, %104, %c0_66] : memref<2x8x32xf32, #tpu.memory_space<vmem>>, vector<1x1x32xf32>
    %106 = vector.shape_cast %105 : vector<1x1x32xf32> to vector<1x32xf32>
    %107 = vector.shape_cast %103 : vector<1x32xf32> to vector<1x1x32xf32>
    tpu.vector_store %arg12[%c1_65, %104, %c0_66], %107 {strides = array<i32>} : memref<2x8x32xf32, #tpu.memory_space<vmem>>, vector<1x1x32xf32>,
    %c4_i32 = arith.constant 4 : i32
    %c0_67 = arith.constant 0 : index
    %108 = arith.index_cast %c4_i32 : i32 to index
    %c0_68 = arith.constant 0 : index
    %109 = vector.load %arg12[%c0_67, %108, %c0_68] : memref<2x8x32xf32, #tpu.memory_space<vmem>>, vector<1x1x32xf32>
    %110 = vector.shape_cast %109 : vector<1x1x32xf32> to vector<1x32xf32>
    %c1_69 = arith.constant 1 : index
    %111 = arith.index_cast %c4_i32 : i32 to index
    %c0_70 = arith.constant 0 : index
    %112 = vector.load %arg12[%c1_69, %111, %c0_70] : memref<2x8x32xf32, #tpu.memory_space<vmem>>, vector<1x1x32xf32>
    %113 = vector.shape_cast %112 : vector<1x1x32xf32> to vector<1x32xf32>
    %114 = tpu.concatenate %110, %113 in 0 : vector<1x32xf32>, vector<1x32xf32> -> vector<2x32xf32>
    %c0_71 = arith.constant 0 : index
    %c0_72 = arith.constant 0 : index
    %115 = vector.load %arg6[%c0_71, %c0_72] : memref<32x32xf32, #tpu.memory_space<vmem>>, vector<32x32xf32>
    %cst_73 = arith.constant dense<0.000000e+00> : vector<2x32xf32>
    %116 = tpu.matmul %97, %115, %cst_73 {dimension_numbers = #tpu.dot_dimension_numbers<[1], [0], [0], [1], [0, 0, 1, 1], [], []>} : vector<2x32xf32>, vector<32x32xf32>, vector<2x32xf32> -> vector<2x32xf32>
    %117 = arith.addf %114, %116 : vector<2x32xf32>
    %118 = math.tanh %117 : vector<2x32xf32>
    %119 = vector.extract_strided_slice %118 {offsets = [0, 0], sizes = [1, 32], strides = [1, 1]} : vector<2x32xf32> to vector<1x32xf32>
    %c0_74 = arith.constant 0 : index
    %120 = arith.index_cast %c4_i32 : i32 to index
    %c0_75 = arith.constant 0 : index
    %121 = vector.load %arg12[%c0_74, %120, %c0_75] : memref<2x8x32xf32, #tpu.memory_space<vmem>>, vector<1x1x32xf32>
    %122 = vector.shape_cast %121 : vector<1x1x32xf32> to vector<1x32xf32>
    %123 = vector.shape_cast %119 : vector<1x32xf32> to vector<1x1x32xf32>
    tpu.vector_store %arg12[%c0_74, %120, %c0_75], %123 {strides = array<i32>} : memref<2x8x32xf32, #tpu.memory_space<vmem>>, vector<1x1x32xf32>,
    %124 = vector.extract_strided_slice %118 {offsets = [1, 0], sizes = [1, 32], strides = [1, 1]} : vector<2x32xf32> to vector<1x32xf32>
    %c1_76 = arith.constant 1 : index
    %125 = arith.index_cast %c4_i32 : i32 to index
    %c0_77 = arith.constant 0 : index
    %126 = vector.load %arg12[%c1_76, %125, %c0_77] : memref<2x8x32xf32, #tpu.memory_space<vmem>>, vector<1x1x32xf32>
    %127 = vector.shape_cast %126 : vector<1x1x32xf32> to vector<1x32xf32>
    %128 = vector.shape_cast %124 : vector<1x32xf32> to vector<1x1x32xf32>
    tpu.vector_store %arg12[%c1_76, %125, %c0_77], %128 {strides = array<i32>} : memref<2x8x32xf32, #tpu.memory_space<vmem>>, vector<1x1x32xf32>,
    %c5_i32 = arith.constant 5 : i32
    %c0_78 = arith.constant 0 : index
    %129 = arith.index_cast %c5_i32 : i32 to index
    %c0_79 = arith.constant 0 : index
    %130 = vector.load %arg12[%c0_78, %129, %c0_79] : memref<2x8x32xf32, #tpu.memory_space<vmem>>, vector<1x1x32xf32>
    %131 = vector.shape_cast %130 : vector<1x1x32xf32> to vector<1x32xf32>
    %c1_80 = arith.constant 1 : index
    %132 = arith.index_cast %c5_i32 : i32 to index
    %c0_81 = arith.constant 0 : index
    %133 = vector.load %arg12[%c1_80, %132, %c0_81] : memref<2x8x32xf32, #tpu.memory_space<vmem>>, vector<1x1x32xf32>
    %134 = vector.shape_cast %133 : vector<1x1x32xf32> to vector<1x32xf32>
    %135 = tpu.concatenate %131, %134 in 0 : vector<1x32xf32>, vector<1x32xf32> -> vector<2x32xf32>
    %c0_82 = arith.constant 0 : index
    %c0_83 = arith.constant 0 : index
    %136 = vector.load %arg6[%c0_82, %c0_83] : memref<32x32xf32, #tpu.memory_space<vmem>>, vector<32x32xf32>
    %cst_84 = arith.constant dense<0.000000e+00> : vector<2x32xf32>
    %137 = tpu.matmul %118, %136, %cst_84 {dimension_numbers = #tpu.dot_dimension_numbers<[1], [0], [0], [1], [0, 0, 1, 1], [], []>} : vector<2x32xf32>, vector<32x32xf32>, vector<2x32xf32> -> vector<2x32xf32>
    %138 = arith.addf %135, %137 : vector<2x32xf32>
    %139 = math.tanh %138 : vector<2x32xf32>
    %140 = vector.extract_strided_slice %139 {offsets = [0, 0], sizes = [1, 32], strides = [1, 1]} : vector<2x32xf32> to vector<1x32xf32>
    %c0_85 = arith.constant 0 : index
    %141 = arith.index_cast %c5_i32 : i32 to index
    %c0_86 = arith.constant 0 : index
    %142 = vector.load %arg12[%c0_85, %141, %c0_86] : memref<2x8x32xf32, #tpu.memory_space<vmem>>, vector<1x1x32xf32>
    %143 = vector.shape_cast %142 : vector<1x1x32xf32> to vector<1x32xf32>
    %144 = vector.shape_cast %140 : vector<1x32xf32> to vector<1x1x32xf32>
    tpu.vector_store %arg12[%c0_85, %141, %c0_86], %144 {strides = array<i32>} : memref<2x8x32xf32, #tpu.memory_space<vmem>>, vector<1x1x32xf32>,
    %145 = vector.extract_strided_slice %139 {offsets = [1, 0], sizes = [1, 32], strides = [1, 1]} : vector<2x32xf32> to vector<1x32xf32>
    %c1_87 = arith.constant 1 : index
    %146 = arith.index_cast %c5_i32 : i32 to index
    %c0_88 = arith.constant 0 : index
    %147 = vector.load %arg12[%c1_87, %146, %c0_88] : memref<2x8x32xf32, #tpu.memory_space<vmem>>, vector<1x1x32xf32>
    %148 = vector.shape_cast %147 : vector<1x1x32xf32> to vector<1x32xf32>
    %149 = vector.shape_cast %145 : vector<1x32xf32> to vector<1x1x32xf32>
    tpu.vector_store %arg12[%c1_87, %146, %c0_88], %149 {strides = array<i32>} : memref<2x8x32xf32, #tpu.memory_space<vmem>>, vector<1x1x32xf32>,
    %c6_i32 = arith.constant 6 : i32
    %c0_89 = arith.constant 0 : index
    %150 = arith.index_cast %c6_i32 : i32 to index
    %c0_90 = arith.constant 0 : index
    %151 = vector.load %arg12[%c0_89, %150, %c0_90] : memref<2x8x32xf32, #tpu.memory_space<vmem>>, vector<1x1x32xf32>
    %152 = vector.shape_cast %151 : vector<1x1x32xf32> to vector<1x32xf32>
    %c1_91 = arith.constant 1 : index
    %153 = arith.index_cast %c6_i32 : i32 to index
    %c0_92 = arith.constant 0 : index
    %154 = vector.load %arg12[%c1_91, %153, %c0_92] : memref<2x8x32xf32, #tpu.memory_space<vmem>>, vector<1x1x32xf32>
    %155 = vector.shape_cast %154 : vector<1x1x32xf32> to vector<1x32xf32>
    %156 = tpu.concatenate %152, %155 in 0 : vector<1x32xf32>, vector<1x32xf32> -> vector<2x32xf32>
    %c0_93 = arith.constant 0 : index
    %c0_94 = arith.constant 0 : index
    %157 = vector.load %arg6[%c0_93, %c0_94] : memref<32x32xf32, #tpu.memory_space<vmem>>, vector<32x32xf32>
    %cst_95 = arith.constant dense<0.000000e+00> : vector<2x32xf32>
    %158 = tpu.matmul %139, %157, %cst_95 {dimension_numbers = #tpu.dot_dimension_numbers<[1], [0], [0], [1], [0, 0, 1, 1], [], []>} : vector<2x32xf32>, vector<32x32xf32>, vector<2x32xf32> -> vector<2x32xf32>
    %159 = arith.addf %156, %158 : vector<2x32xf32>
    %160 = math.tanh %159 : vector<2x32xf32>
    %161 = vector.extract_strided_slice %160 {offsets = [0, 0], sizes = [1, 32], strides = [1, 1]} : vector<2x32xf32> to vector<1x32xf32>
    %c0_96 = arith.constant 0 : index
    %162 = arith.index_cast %c6_i32 : i32 to index
    %c0_97 = arith.constant 0 : index
    %163 = vector.load %arg12[%c0_96, %162, %c0_97] : memref<2x8x32xf32, #tpu.memory_space<vmem>>, vector<1x1x32xf32>
    %164 = vector.shape_cast %163 : vector<1x1x32xf32> to vector<1x32xf32>
    %165 = vector.shape_cast %161 : vector<1x32xf32> to vector<1x1x32xf32>
    tpu.vector_store %arg12[%c0_96, %162, %c0_97], %165 {strides = array<i32>} : memref<2x8x32xf32, #tpu.memory_space<vmem>>, vector<1x1x32xf32>,
    %166 = vector.extract_strided_slice %160 {offsets = [1, 0], sizes = [1, 32], strides = [1, 1]} : vector<2x32xf32> to vector<1x32xf32>
    %c1_98 = arith.constant 1 : index
    %167 = arith.index_cast %c6_i32 : i32 to index
    %c0_99 = arith.constant 0 : index
    %168 = vector.load %arg12[%c1_98, %167, %c0_99] : memref<2x8x32xf32, #tpu.memory_space<vmem>>, vector<1x1x32xf32>
    %169 = vector.shape_cast %168 : vector<1x1x32xf32> to vector<1x32xf32>
    %170 = vector.shape_cast %166 : vector<1x32xf32> to vector<1x1x32xf32>
    tpu.vector_store %arg12[%c1_98, %167, %c0_99], %170 {strides = array<i32>} : memref<2x8x32xf32, #tpu.memory_space<vmem>>, vector<1x1x32xf32>,
    %c7_i32 = arith.constant 7 : i32
    %c0_100 = arith.constant 0 : index
    %171 = arith.index_cast %c7_i32 : i32 to index
    %c0_101 = arith.constant 0 : index
    %172 = vector.load %arg12[%c0_100, %171, %c0_101] : memref<2x8x32xf32, #tpu.memory_space<vmem>>, vector<1x1x32xf32>
    %173 = vector.shape_cast %172 : vector<1x1x32xf32> to vector<1x32xf32>
    %c1_102 = arith.constant 1 : index
    %174 = arith.index_cast %c7_i32 : i32 to index
    %c0_103 = arith.constant 0 : index
    %175 = vector.load %arg12[%c1_102, %174, %c0_103] : memref<2x8x32xf32, #tpu.memory_space<vmem>>, vector<1x1x32xf32>
    %176 = vector.shape_cast %175 : vector<1x1x32xf32> to vector<1x32xf32>
    %177 = tpu.concatenate %173, %176 in 0 : vector<1x32xf32>, vector<1x32xf32> -> vector<2x32xf32>
    %c0_104 = arith.constant 0 : index
    %c0_105 = arith.constant 0 : index
    %178 = vector.load %arg6[%c0_104, %c0_105] : memref<32x32xf32, #tpu.memory_space<vmem>>, vector<32x32xf32>
    %cst_106 = arith.constant dense<0.000000e+00> : vector<2x32xf32>
    %179 = tpu.matmul %160, %178, %cst_106 {dimension_numbers = #tpu.dot_dimension_numbers<[1], [0], [0], [1], [0, 0, 1, 1], [], []>} : vector<2x32xf32>, vector<32x32xf32>, vector<2x32xf32> -> vector<2x32xf32>
    %180 = arith.addf %177, %179 : vector<2x32xf32>
    %181 = math.tanh %180 : vector<2x32xf32>
    %182 = vector.extract_strided_slice %181 {offsets = [0, 0], sizes = [1, 32], strides = [1, 1]} : vector<2x32xf32> to vector<1x32xf32>
    %c0_107 = arith.constant 0 : index
    %183 = arith.index_cast %c7_i32 : i32 to index
    %c0_108 = arith.constant 0 : index
    %184 = vector.load %arg12[%c0_107, %183, %c0_108] : memref<2x8x32xf32, #tpu.memory_space<vmem>>, vector<1x1x32xf32>
    %185 = vector.shape_cast %184 : vector<1x1x32xf32> to vector<1x32xf32>
    %186 = vector.shape_cast %182 : vector<1x32xf32> to vector<1x1x32xf32>
    tpu.vector_store %arg12[%c0_107, %183, %c0_108], %186 {strides = array<i32>} : memref<2x8x32xf32, #tpu.memory_space<vmem>>, vector<1x1x32xf32>,
    %187 = vector.extract_strided_slice %181 {offsets = [1, 0], sizes = [1, 32], strides = [1, 1]} : vector<2x32xf32> to vector<1x32xf32>
    %c1_109 = arith.constant 1 : index
    %188 = arith.index_cast %c7_i32 : i32 to index
    %c0_110 = arith.constant 0 : index
    %189 = vector.load %arg12[%c1_109, %188, %c0_110] : memref<2x8x32xf32, #tpu.memory_space<vmem>>, vector<1x1x32xf32>
    %190 = vector.shape_cast %189 : vector<1x1x32xf32> to vector<1x32xf32>
    %191 = vector.shape_cast %187 : vector<1x32xf32> to vector<1x1x32xf32>
    tpu.vector_store %arg12[%c1_109, %188, %c0_110], %191 {strides = array<i32>} : memref<2x8x32xf32, #tpu.memory_space<vmem>>, vector<1x1x32xf32>,
    %c8_i32 = arith.constant 8 : i32
    %c0_111 = arith.constant 0 : index
    %c0_112 = arith.constant 0 : index
    %192 = vector.load %arg11[%c0_111, %c0_112] : memref<2x32xf32, #tpu.memory_space<vmem>>, vector<2x32xf32>
    tpu.vector_store %arg11[%c0_111, %c0_112], %181 {strides = array<i32>} : memref<2x32xf32, #tpu.memory_space<vmem>>, vector<2x32xf32>,
    %c0_113 = arith.constant 0 : index
    %c0_114 = arith.constant 0 : index
    %c0_115 = arith.constant 0 : index
    %193 = vector.load %arg12[%c0_113, %c0_114, %c0_115] : memref<2x8x32xf32, #tpu.memory_space<vmem>>, vector<1x8x32xf32>
    %194 = vector.shape_cast %193 : vector<1x8x32xf32> to vector<8x32xf32>
    %c0_116 = arith.constant 0 : index
    %c0_117 = arith.constant 0 : index
    %195 = vector.load %arg7[%c0_116, %c0_117] : memref<32x256xf32, #tpu.memory_space<vmem>>, vector<32x256xf32>
    %cst_118 = arith.constant dense<0.000000e+00> : vector<8x256xf32>
    %196 = tpu.matmul %194, %195, %cst_118 {dimension_numbers = #tpu.dot_dimension_numbers<[1], [0], [0], [1], [0, 0, 1, 1], [], []>} : vector<8x32xf32>, vector<32x256xf32>, vector<8x256xf32> -> vector<8x256xf32>
    %197 = arith.negf %196 : vector<8x256xf32>
    %198 = math.exp %197 : vector<8x256xf32>
    %cst_119 = arith.constant 1.000000e+00 : f32
    %199 = vector.broadcast %cst_119 : f32 to vector<8x256xf32>
    %200 = arith.addf %199, %198 : vector<8x256xf32>
    %201 = arith.divf %199, %200 : vector<8x256xf32>
    %c0_120 = arith.constant 0 : index
    %c0_121 = arith.constant 0 : index
    %c0_122 = arith.constant 0 : index
    %202 = vector.load %arg10[%c0_120, %c0_121, %c0_122] : memref<2x8x256xf32, #tpu.memory_space<vmem>>, vector<1x8x256xf32>
    %203 = vector.shape_cast %202 : vector<1x8x256xf32> to vector<8x256xf32>
    %204 = vector.shape_cast %201 : vector<8x256xf32> to vector<1x8x256xf32>
    tpu.vector_store %arg10[%c0_120, %c0_121, %c0_122], %204 {strides = array<i32>} : memref<2x8x256xf32, #tpu.memory_space<vmem>>, vector<1x8x256xf32>,
    %c0_123 = arith.constant 0 : index
    %c0_124 = arith.constant 0 : index
    %205 = vector.load %arg8[%c0_123, %c0_124] : memref<256x256xf32, #tpu.memory_space<vmem>>, vector<256x256xf32>
    %cst_125 = arith.constant dense<0.000000e+00> : vector<8x256xf32>
    %206 = tpu.matmul %201, %205, %cst_125 {dimension_numbers = #tpu.dot_dimension_numbers<[1], [0], [0], [1], [0, 0, 1, 1], [], []>} : vector<8x256xf32>, vector<256x256xf32>, vector<8x256xf32> -> vector<8x256xf32>
    %c0_126 = arith.constant 0 : index
    %c0_127 = arith.constant 0 : index
    %c0_128 = arith.constant 0 : index
    %207 = vector.load %arg9[%c0_126, %c0_127, %c0_128] : memref<2x8x256xf32, #tpu.memory_space<vmem>>, vector<1x8x256xf32>
    %208 = vector.shape_cast %207 : vector<1x8x256xf32> to vector<8x256xf32>
    %209 = vector.shape_cast %206 : vector<8x256xf32> to vector<1x8x256xf32>
    tpu.vector_store %arg9[%c0_126, %c0_127, %c0_128], %209 {strides = array<i32>} : memref<2x8x256xf32, #tpu.memory_space<vmem>>, vector<1x8x256xf32>,
    %c1_129 = arith.constant 1 : index
    %c0_130 = arith.constant 0 : index
    %c0_131 = arith.constant 0 : index
    %210 = vector.load %arg12[%c1_129, %c0_130, %c0_131] : memref<2x8x32xf32, #tpu.memory_space<vmem>>, vector<1x8x32xf32>
    %211 = vector.shape_cast %210 : vector<1x8x32xf32> to vector<8x32xf32>
    %c0_132 = arith.constant 0 : index
    %c0_133 = arith.constant 0 : index
    %212 = vector.load %arg7[%c0_132, %c0_133] : memref<32x256xf32, #tpu.memory_space<vmem>>, vector<32x256xf32>
    %cst_134 = arith.constant dense<0.000000e+00> : vector<8x256xf32>
    %213 = tpu.matmul %211, %212, %cst_134 {dimension_numbers = #tpu.dot_dimension_numbers<[1], [0], [0], [1], [0, 0, 1, 1], [], []>} : vector<8x32xf32>, vector<32x256xf32>, vector<8x256xf32> -> vector<8x256xf32>
    %214 = arith.negf %213 : vector<8x256xf32>
    %215 = math.exp %214 : vector<8x256xf32>
    %cst_135 = arith.constant 1.000000e+00 : f32
    %216 = vector.broadcast %cst_135 : f32 to vector<8x256xf32>
    %217 = arith.addf %216, %215 : vector<8x256xf32>
    %218 = arith.divf %216, %217 : vector<8x256xf32>
    %c1_136 = arith.constant 1 : index
    %c0_137 = arith.constant 0 : index
    %c0_138 = arith.constant 0 : index
    %219 = vector.load %arg10[%c1_136, %c0_137, %c0_138] : memref<2x8x256xf32, #tpu.memory_space<vmem>>, vector<1x8x256xf32>
    %220 = vector.shape_cast %219 : vector<1x8x256xf32> to vector<8x256xf32>
    %221 = vector.shape_cast %218 : vector<8x256xf32> to vector<1x8x256xf32>
    tpu.vector_store %arg10[%c1_136, %c0_137, %c0_138], %221 {strides = array<i32>} : memref<2x8x256xf32, #tpu.memory_space<vmem>>, vector<1x8x256xf32>,
    %c0_139 = arith.constant 0 : index
    %c0_140 = arith.constant 0 : index
    %222 = vector.load %arg8[%c0_139, %c0_140] : memref<256x256xf32, #tpu.memory_space<vmem>>, vector<256x256xf32>
    %cst_141 = arith.constant dense<0.000000e+00> : vector<8x256xf32>
    %223 = tpu.matmul %218, %222, %cst_141 {dimension_numbers = #tpu.dot_dimension_numbers<[1], [0], [0], [1], [0, 0, 1, 1], [], []>} : vector<8x256xf32>, vector<256x256xf32>, vector<8x256xf32> -> vector<8x256xf32>
    %c1_142 = arith.constant 1 : index
    %c0_143 = arith.constant 0 : index
    %c0_144 = arith.constant 0 : index
    %224 = vector.load %arg9[%c1_142, %c0_143, %c0_144] : memref<2x8x256xf32, #tpu.memory_space<vmem>>, vector<1x8x256xf32>
    %225 = vector.shape_cast %224 : vector<1x8x256xf32> to vector<8x256xf32>
    %226 = vector.shape_cast %223 : vector<8x256xf32> to vector<1x8x256xf32>
    tpu.vector_store %arg9[%c1_142, %c0_143, %c0_144], %226 {strides = array<i32>} : memref<2x8x256xf32, #tpu.memory_space<vmem>>, vector<1x8x256xf32>,
    return
  }
  func.func @transform_0(%arg0: i32, %arg1: i32) -> (i32, i32, i32) {
    %c0_i32 = arith.constant 0 : i32
    %c0_i32_0 = arith.constant 0 : i32
    return %arg0, %arg1, %c0_i32 : i32, i32, i32
  }
  func.func @transform_1(%arg0: i32, %arg1: i32) -> (i32, i32) {
    %c0_i32 = arith.constant 0 : i32
    %c0_i32_0 = arith.constant 0 : i32
    return %arg0, %c0_i32 : i32, i32
  }
  func.func @transform_2(%arg0: i32, %arg1: i32) -> (i32, i32) {
    %c0_i32 = arith.constant 0 : i32
    %c0_i32_0 = arith.constant 0 : i32
    %c0_i32_1 = arith.constant 0 : i32
    return %c0_i32, %c0_i32_0 : i32, i32
  }
  func.func @transform_3(%arg0: i32, %arg1: i32) -> (i32, i32) {
    %c0_i32 = arith.constant 0 : i32
    %c0_i32_0 = arith.constant 0 : i32
    %c0_i32_1 = arith.constant 0 : i32
    return %c0_i32, %c0_i32_0 : i32, i32
  }
  func.func @transform_4(%arg0: i32, %arg1: i32) -> (i32, i32) {
    %c0_i32 = arith.constant 0 : i32
    %c0_i32_0 = arith.constant 0 : i32
    %c0_i32_1 = arith.constant 0 : i32
    return %c0_i32, %c0_i32_0 : i32, i32
  }
  func.func @transform_5(%arg0: i32, %arg1: i32) -> (i32, i32) {
    %c0_i32 = arith.constant 0 : i32
    %c0_i32_0 = arith.constant 0 : i32
    %c0_i32_1 = arith.constant 0 : i32
    return %c0_i32, %c0_i32_0 : i32, i32
  }
  func.func @transform_6(%arg0: i32, %arg1: i32) -> (i32, i32) {
    %c0_i32 = arith.constant 0 : i32
    %c0_i32_0 = arith.constant 0 : i32
    %c0_i32_1 = arith.constant 0 : i32
    return %c0_i32, %c0_i32_0 : i32, i32
  }
  func.func @transform_7(%arg0: i32, %arg1: i32) -> (i32, i32, i32) {
    %c0_i32 = arith.constant 0 : i32
    %c0_i32_0 = arith.constant 0 : i32
    return %arg0, %arg1, %c0_i32 : i32, i32, i32
  }
  func.func @transform_8(%arg0: i32, %arg1: i32) -> (i32, i32, i32) {
    %c0_i32 = arith.constant 0 : i32
    %c0_i32_0 = arith.constant 0 : i32
    return %arg0, %arg1, %c0_i32 : i32, i32, i32
  }
}

</mosaic_0001>

<llo_original>
// kernel: tpu_custom_call.1
$region0: #{tpu_custom_call.1}
  #allocation0 [shape = 'u32[]', space=smem, size = 0x4, offset = 0x4, fixed_abs, tag = 'smem constant byte address 0x4 - core index']
  #allocation1 [shape = 'u32[144,128]{1,0:T(1,128)}', space=vmem, size = 0x12000, scoped, tag = 'internal scratch']
  #allocation2 [shape = 'f32[2,32]{1,0:T(2,128)}', space=vmem, size = 0x400, scoped, tag = 'scratch operand']
  #allocation3 [shape = 'f32[2,8,32]{2,1,0:T(8,128)}', space=vmem, size = 0x2000, scoped, tag = 'scratch operand']
  %s0 = inlined_call_operand.vmem [shape: f32[2,16,256], index: 0, kind: input, shape index: {}]
  %s1 = inlined_call_operand.vmem [shape: f32[2,32], index: 1, kind: input, shape index: {}]
  %s2 = inlined_call_operand.vmem [shape: f32[256,32], index: 2, kind: input, shape index: {}]
  %s3 = inlined_call_operand.vmem [shape: f32[1,32], index: 3, kind: input, shape index: {}]
  %s4 = inlined_call_operand.vmem [shape: f32[32,32], index: 4, kind: input, shape index: {}]
  %s5 = inlined_call_operand.vmem [shape: f32[32,256], index: 5, kind: input, shape index: {}]
  %s6 = inlined_call_operand.hbm [shape: f32[256,256], index: 6, kind: input, shape index: {}]
  %s7 = inlined_call_operand.hbm [shape: f32[2,16,256], index: 7, kind: output, shape index: {0}]
  %s8 = inlined_call_operand.hbm [shape: f32[2,16,256], index: 8, kind: output, shape index: {1}]
  %9 = xla_tuple %s7, %s8
  %s10 = sld [smem:[#allocation0]]
  $region100: #{tpu_custom_call.1} parent=0
    _
  %s12 = ssub.s32 1, %s10
  %s13 = scalar_select 0, %s12, %s10
  $region1: #{tpu_custom_call.1} parent=0
    #allocation4 [shape = 'u8[32768]{0}', space=vmem, size = 0x8000, scoped, tag = 'input window, operand 0']
    #allocation5 [shape = 'u8[262144]{0}', space=vmem, size = 0x40000, scoped, tag = 'input window, operand 6, single buffered']
    #allocation6 [shape = 's32[2]{0}', space=sflag, size = 0x8, scoped, tag = 'scoped memory for tpu_custom_call.1']
    #allocation7 [shape = 's32[2]{0}', space=sflag, size = 0x8, scoped, tag = 'scoped memory for tpu_custom_call.1']
    #allocation8 [shape = 'u8[32768]{0}', space=vmem, size = 0x8000, scoped, tag = 'output window, operand 0']
    #allocation9 [shape = 'u8[32768]{0}', space=vmem, size = 0x8000, scoped, tag = 'output window, operand 1']
    #allocation10 [shape = 's32[2]{0}', space=sflag, size = 0x8, scoped, tag = 'scoped memory for tpu_custom_call.1']
    %14 = vsyncpa [#allocation6], 0
    %15 = vsyncpa [#allocation7], 0
    %s16 = scalar_lea.sflag [#allocation7], 1
    %17 = vsyncpa %s16, 0
    %18 = vsyncpa [#allocation10], 0
    %s19 = scalar_lea.sflag [#allocation10], 1
    %20 = vsyncpa %s19, 0
    loop: start=0, step=1, limit=4
    $region2: #{tpu_custom_call.1} parent=1 // loop_pre_header
      _
    $region3: #{tpu_custom_call.1} parent=1 // loop_header
      %s22 = sphi 0, %s26
      %p23 = scmp.ge.s32.totalorder %s22, 4
      %s29 = sphi 0, %s41
      %s30 = sphi 0, %s37
      %s31 = sphi 0, %s29
      %s32 = sphi 0, %s30
      %s33 = sphi 0, %s31
      %s34 = sphi 0, %s32
      %s46 = sphi 0, %s48
      %s49 = sphi 0, %s46
      %s50 = sphi 0, %s49
      %s66 = sphi 0, %s50
      %s72 = sphi 0, %s74
      %s75 = sphi 0, %s72
      %s76 = sphi 0, %s75
      %s92 = sphi 0, %s76
      %s96 = sphi 0, %s96
      %s98 = sphi 0, %s96
      %s99 = sphi 0, %s98
      %s113 = sphi 0, %s99
      %s117 = sphi 0, %s117
      %s119 = sphi 0, %s117
      %s120 = sphi 0, %s119
      %s134 = sphi 0, %s120
      %s138 = sphi 0, %s138
      %s140 = sphi 0, %s138
      %s141 = sphi 0, %s140
      %s155 = sphi 0, %s141
      %s159 = sphi 0, %s159
      %s161 = sphi 0, %s159
      %s162 = sphi 0, %s161
      %s176 = sphi 0, %s162
      %s180 = sphi 0, %s180
      %s182 = sphi 0, %s180
      %s183 = sphi 0, %s182
      %s197 = sphi 0, %s183
      %s205 = sphi 0, %s207
      %s208 = sphi 0, %s205
      %s209 = sphi 0, %s208
      %s225 = sphi 0, %s209
      %s233 = sphi 0, %s235
      %s236 = sphi 0, %s233
      %s237 = sphi 0, %s236
      %s253 = sphi 0, %s237
    $region4: #{tpu_custom_call.1} parent=1 // loop_header_branch
      %25 = sbr.rel (%p23) target = $region8
    $region5: #{tpu_custom_call.1} parent=1 // loop_body
      %s27 = ssub.s32 %s22, 1
      %s28 = ssub.s32 %s22, 2
      %s35 = sadd.s32 1, %s30
      %p36 = scmp.ge.s32.totalorder %s35, 2
      %s37 = scalar_select %p36, 0, %s35
      %s38 = sadd.s32 1, %s29
      %s39 = scalar_select %p36, %s38, %s29
      %p40 = scmp.ge.s32.totalorder %s39, 1
      %s41 = scalar_select %p40, 0, %s39
      %s42 = ssub.s32 %s29, %s41
      %s43 = ssub.s32 %s30, %s37
      %s44 = sor.u32 %s42, %s43
      %p45 = scmp.eq.s32.totalorder %s44, 0
      %s47 = sadd.s32 %s46, 1
      %s48 = scalar_select %p45, %s46, %s47
      %p51 = pneg %p45
      %p52 = scmp.eq.s32.totalorder %s22, 1
      %p53 = por %p51, %p52
      %p54 = scmp.ne.s32.totalorder %s46, %s49
      %p55 = scmp.eq.s32.totalorder %s22, 0
      %p56 = por %p54, %p55
      %p57 = scmp.ne.s32.totalorder %s46, %s49
      %p58 = scmp.eq.s32.totalorder %s27, 1
      %p59 = por %p57, %p58
      %p60 = scmp.ne.s32.totalorder %s49, %s50
      %p61 = scmp.eq.s32.totalorder %s27, 0
      %p62 = por %p60, %p61
      %p63 = scmp.ne.s32.totalorder %s49, %s50
      %p64 = scmp.eq.s32.totalorder %s28, 1
      %p65 = por %p63, %p64
      %p67 = scmp.ne.s32.totalorder %s50, %s66
      %p68 = scmp.eq.s32.totalorder %s28, 0
      %p69 = por %p67, %p68
      %s70 = ssub.s32 %s29, %s41
      %p71 = scmp.eq.s32.totalorder %s70, 0
      %s73 = sadd.s32 %s72, 1
      %s74 = scalar_select %p71, %s72, %s73
      %p77 = pneg %p71
      %p78 = scmp.eq.s32.totalorder %s22, 1
      %p79 = por %p77, %p78
      %p80 = scmp.ne.s32.totalorder %s72, %s75
      %p81 = scmp.eq.s32.totalorder %s22, 0
      %p82 = por %p80, %p81
      %p83 = scmp.ne.s32.totalorder %s72, %s75
      %p84 = scmp.eq.s32.totalorder %s27, 1
      %p85 = por %p83, %p84
      %p86 = scmp.ne.s32.totalorder %s75, %s76
      %p87 = scmp.eq.s32.totalorder %s27, 0
      %p88 = por %p86, %p87
      %p89 = scmp.ne.s32.totalorder %s75, %s76
      %p90 = scmp.eq.s32.totalorder %s28, 1
      %p91 = por %p89, %p90
      %p93 = scmp.ne.s32.totalorder %s76, %s92
      %p94 = scmp.eq.s32.totalorder %s28, 0
      %p95 = por %p93, %p94
      %s97 = sadd.s32 %s96, 1
      %p100 = scmp.eq.s32.totalorder %s22, 1
      %p101 = scmp.ne.s32.totalorder %s96, %s98
      %p102 = scmp.eq.s32.totalorder %s22, 0
      %p103 = por %p101, %p102
      %p104 = scmp.ne.s32.totalorder %s96, %s98
      %p105 = scmp.eq.s32.totalorder %s27, 1
      %p106 = por %p104, %p105
      %p107 = scmp.ne.s32.totalorder %s98, %s99
      %p108 = scmp.eq.s32.totalorder %s27, 0
      %p109 = por %p107, %p108
      %p110 = scmp.ne.s32.totalorder %s98, %s99
      %p111 = scmp.eq.s32.totalorder %s28, 1
      %p112 = por %p110, %p111
      %p114 = scmp.ne.s32.totalorder %s99, %s113
      %p115 = scmp.eq.s32.totalorder %s28, 0
      %p116 = por %p114, %p115
      %s118 = sadd.s32 %s117, 1
      %p121 = scmp.eq.s32.totalorder %s22, 1
      %p122 = scmp.ne.s32.totalorder %s117, %s119
      %p123 = scmp.eq.s32.totalorder %s22, 0
      %p124 = por %p122, %p123
      %p125 = scmp.ne.s32.totalorder %s117, %s119
      %p126 = scmp.eq.s32.totalorder %s27, 1
      %p127 = por %p125, %p126
      %p128 = scmp.ne.s32.totalorder %s119, %s120
      %p129 = scmp.eq.s32.totalorder %s27, 0
      %p130 = por %p128, %p129
      %p131 = scmp.ne.s32.totalorder %s119, %s120
      %p132 = scmp.eq.s32.totalorder %s28, 1
      %p133 = por %p131, %p132
      %p135 = scmp.ne.s32.totalorder %s120, %s134
      %p136 = scmp.eq.s32.totalorder %s28, 0
      %p137 = por %p135, %p136
      %s139 = sadd.s32 %s138, 1
      %p142 = scmp.eq.s32.totalorder %s22, 1
      %p143 = scmp.ne.s32.totalorder %s138, %s140
      %p144 = scmp.eq.s32.totalorder %s22, 0
      %p145 = por %p143, %p144
      %p146 = scmp.ne.s32.totalorder %s138, %s140
      %p147 = scmp.eq.s32.totalorder %s27, 1
      %p148 = por %p146, %p147
      %p149 = scmp.ne.s32.totalorder %s140, %s141
      %p150 = scmp.eq.s32.totalorder %s27, 0
      %p151 = por %p149, %p150
      %p152 = scmp.ne.s32.totalorder %s140, %s141
      %p153 = scmp.eq.s32.totalorder %s28, 1
      %p154 = por %p152, %p153
      %p156 = scmp.ne.s32.totalorder %s141, %s155
      %p157 = scmp.eq.s32.totalorder %s28, 0
      %p158 = por %p156, %p157
      %s160 = sadd.s32 %s159, 1
      %p163 = scmp.eq.s32.totalorder %s22, 1
      %p164 = scmp.ne.s32.totalorder %s159, %s161
      %p165 = scmp.eq.s32.totalorder %s22, 0
      %p166 = por %p164, %p165
      %p167 = scmp.ne.s32.totalorder %s159, %s161
      %p168 = scmp.eq.s32.totalorder %s27, 1
      %p169 = por %p167, %p168
      %p170 = scmp.ne.s32.totalorder %s161, %s162
      %p171 = scmp.eq.s32.totalorder %s27, 0
      %p172 = por %p170, %p171
      %p173 = scmp.ne.s32.totalorder %s161, %s162
      %p174 = scmp.eq.s32.totalorder %s28, 1
      %p175 = por %p173, %p174
      %p177 = scmp.ne.s32.totalorder %s162, %s176
      %p178 = scmp.eq.s32.totalorder %s28, 0
      %p179 = por %p177, %p178
      %s181 = sadd.s32 %s180, 1
      %p184 = scmp.eq.s32.totalorder %s22, 1
      %p185 = scmp.ne.s32.totalorder %s180, %s182
      %p186 = scmp.eq.s32.totalorder %s22, 0
      %p187 = por %p185, %p186
      %p188 = scmp.ne.s32.totalorder %s180, %s182
      %p189 = scmp.eq.s32.totalorder %s27, 1
      %p190 = por %p188, %p189
      %p191 = scmp.ne.s32.totalorder %s182, %s183
      %p192 = scmp.eq.s32.totalorder %s27, 0
      %p193 = por %p191, %p192
      %p194 = scmp.ne.s32.totalorder %s182, %s183
      %p195 = scmp.eq.s32.totalorder %s28, 1
      %p196 = por %p194, %p195
      %p198 = scmp.ne.s32.totalorder %s183, %s197
      %p199 = scmp.eq.s32.totalorder %s28, 0
      %p200 = por %p198, %p199
      %s201 = ssub.s32 %s29, %s41
      %s202 = ssub.s32 %s30, %s37
      %s203 = sor.u32 %s201, %s202
      %p204 = scmp.eq.s32.totalorder %s203, 0
      %s206 = sadd.s32 %s205, 1
      %s207 = scalar_select %p204, %s205, %s206
      %p210 = pneg %p204
      %p211 = scmp.eq.s32.totalorder %s22, 1
      %p212 = por %p210, %p211
      %p213 = scmp.ne.s32.totalorder %s205, %s208
      %p214 = scmp.eq.s32.totalorder %s22, 0
      %p215 = por %p213, %p214
      %p216 = scmp.ne.s32.totalorder %s205, %s208
      %p217 = scmp.eq.s32.totalorder %s27, 1
      %p218 = por %p216, %p217
      %p219 = scmp.ne.s32.totalorder %s208, %s209
      %p220 = scmp.eq.s32.totalorder %s27, 0
      %p221 = por %p219, %p220
      %p222 = scmp.ne.s32.totalorder %s208, %s209
      %p223 = scmp.eq.s32.totalorder %s28, 1
      %p224 = por %p222, %p223
      %p226 = scmp.ne.s32.totalorder %s209, %s225
      %p227 = scmp.eq.s32.totalorder %s28, 0
      %p228 = por %p226, %p227
      %s229 = ssub.s32 %s29, %s41
      %s230 = ssub.s32 %s30, %s37
      %s231 = sor.u32 %s229, %s230
      %p232 = scmp.eq.s32.totalorder %s231, 0
      %s234 = sadd.s32 %s233, 1
      %s235 = scalar_select %p232, %s233, %s234
      %p238 = pneg %p232
      %p239 = scmp.eq.s32.totalorder %s22, 1
      %p240 = por %p238, %p239
      %p241 = scmp.ne.s32.totalorder %s233, %s236
      %p242 = scmp.eq.s32.totalorder %s22, 0
      %p243 = por %p241, %p242
      %p244 = scmp.ne.s32.totalorder %s233, %s236
      %p245 = scmp.eq.s32.totalorder %s27, 1
      %p246 = por %p244, %p245
      %p247 = scmp.ne.s32.totalorder %s236, %s237
      %p248 = scmp.eq.s32.totalorder %s27, 0
      %p249 = por %p247, %p248
      %p250 = scmp.ne.s32.totalorder %s236, %s237
      %p251 = scmp.eq.s32.totalorder %s28, 1
      %p252 = por %p250, %p251
      %p254 = scmp.ne.s32.totalorder %s237, %s253
      %p255 = scmp.eq.s32.totalorder %s28, 0
      %p256 = por %p254, %p255
      %p257 = scmp.le.s32.totalorder 1, %s22
      %p258 = scmp.lt.s32.totalorder %s22, 3
      %p259 = pnand %p257, %p258
      %p260 = pneg %p259
      // Predicated region
      $region9: #{tpu_custom_call.1} parent=5 // pred_check
        _
      $region10: #{tpu_custom_call.1} parent=5 // pred_check_branch
        %262 = sbr.rel (%p259) target = $region12
      $region11: #{tpu_custom_call.1} parent=5 // pred_region
        %s263 = ssub.s32 %s22, 1
        // Predicated region
        $region13: #{tpu_custom_call.1} parent=11 // pred_check
          %p264 = pneg %p88
        $region14: #{tpu_custom_call.1} parent=11 // pred_check_branch
          %266 = sbr.rel (%p264) target = $region16
        $region15: #{tpu_custom_call.1} parent=11 // pred_region
          %p267 = scmp.lt.s32.totalorder %s31, 0
          %s268 = scalar_select %p267, %s31, 0
          %s269 = smul.addr %s268, 2
          %s270 = scalar_lea.vmem %s1, %s269
        $region16: #{tpu_custom_call.1} parent=11 // pred_fallthru
          _
        // Predicated region
        $region17: #{tpu_custom_call.1} parent=11 // pred_check
          %p271 = pneg %p109
        $region18: #{tpu_custom_call.1} parent=11 // pred_check_branch
          %273 = sbr.rel (%p271) target = $region20
        $region19: #{tpu_custom_call.1} parent=11 // pred_region
          _
        $region20: #{tpu_custom_call.1} parent=11 // pred_fallthru
          _
        // Predicated region
        $region21: #{tpu_custom_call.1} parent=11 // pred_check
          %p274 = pneg %p130
        $region22: #{tpu_custom_call.1} parent=11 // pred_check_branch
          %276 = sbr.rel (%p274) target = $region24
        $region23: #{tpu_custom_call.1} parent=11 // pred_region
          _
        $region24: #{tpu_custom_call.1} parent=11 // pred_fallthru
          _
        // Predicated region
        $region25: #{tpu_custom_call.1} parent=11 // pred_check
          %p277 = pneg %p151
        $region26: #{tpu_custom_call.1} parent=11 // pred_check_branch
          %279 = sbr.rel (%p277) target = $region28
        $region27: #{tpu_custom_call.1} parent=11 // pred_region
          _
        $region28: #{tpu_custom_call.1} parent=11 // pred_fallthru
          _
        // Predicated region
        $region29: #{tpu_custom_call.1} parent=11 // pred_check
          %p280 = pneg %p172
        $region30: #{tpu_custom_call.1} parent=11 // pred_check_branch
          %282 = sbr.rel (%p280) target = $region32
        $region31: #{tpu_custom_call.1} parent=11 // pred_region
          _
        $region32: #{tpu_custom_call.1} parent=11 // pred_fallthru
          _
        // Predicated region
        $region33: #{tpu_custom_call.1} parent=11 // pred_check
          %p283 = pneg %p193
        $region34: #{tpu_custom_call.1} parent=11 // pred_check_branch
          %285 = sbr.rel (%p283) target = $region36
        $region35: #{tpu_custom_call.1} parent=11 // pred_region
          %s287 = ssub.s32 8192, 8192
          %288 = vsyncadd [#allocation6], %s287
          %s289 = sshll.u32 [#allocation5], 4
          %s290 = int_to_ptr.vmem [resolvable:$true] %s289
          %295 = dma.hbm_to_vmem [thread:$0]  %s6, 8192, %s290, [#allocation6], 256, 256, 16
        $region36: #{tpu_custom_call.1} parent=11 // pred_fallthru
          _
      $region12: #{tpu_custom_call.1} parent=5 // pred_fallthru
        _
      %p296 = scmp.lt.s32.totalorder %s22, 2
      // Predicated region
      $region37: #{tpu_custom_call.1} parent=5 // pred_check
        %p297 = pneg %p296
      $region38: #{tpu_custom_call.1} parent=5 // pred_check_branch
        %299 = sbr.rel (%p297) target = $region40
      $region39: #{tpu_custom_call.1} parent=5 // pred_region
        // Predicated region
        $region41: #{tpu_custom_call.1} parent=39 // pred_check
          %p300 = pneg %p56
        $region42: #{tpu_custom_call.1} parent=39 // pred_check_branch
          %302 = sbr.rel (%p300) target = $region44
        $region43: #{tpu_custom_call.1} parent=39 // pred_region
          %s303 = sand.u32 %s46, 1
          %s304 = sand.u32 %s46, 1
          %s305 = smul.addr %s304, 32
          %s306 = scalar_lea.vmem [#allocation4], %s305
          %s307 = smul.u32 2, %s29
          %s308 = smul.addr %s30, 2
          %s309 = smul.addr %s307, 4
          %s310 = sadd.s32 %s308, %s309
          %s311 = smul.addr %s310, 8
          %s312 = scalar_lea.vmem %s0, %s311
          // Predicated region
          $region45: #{tpu_custom_call.1} parent=43 // pred_check
            _
          $region46: #{tpu_custom_call.1} parent=43 // pred_check_branch
            %314 = sbr.rel (0) target = $region48
          $region47: #{tpu_custom_call.1} parent=43 // pred_region
            // Predicated region
            $region49: #{tpu_custom_call.1} parent=47 // pred_check
              _
            $region50: #{tpu_custom_call.1} parent=47 // pred_check_branch
              %316 = sbr.rel (0) target = $region52
            $region51: #{tpu_custom_call.1} parent=47 // pred_region
              loop: start=0, step=1, limit=1
              $region53: #{tpu_custom_call.1} parent=51 // loop_pre_header
                _
              $region54: #{tpu_custom_call.1} parent=51 // loop_header
                %s318 = sphi 0, %s322
                %p319 = scmp.ge.s32.totalorder %s318, 1
                %s323 = sphi %s312, %s312
                %s324 = sphi %s306, %s306
              $region55: #{tpu_custom_call.1} parent=51 // loop_header_branch
                %321 = sbr.rel (%p319) target = $region59
              $region56: #{tpu_custom_call.1} parent=51 // loop_body
                %v325 = vld [vmem:[%s323] sm:$0xff]
                %326 = vst [vmem:[%s324] sm:$0xff] %v325
                %v327 = vld [vmem:[%s323 + $0x8] sm:$0xff]
                %328 = vst [vmem:[%s324 + $0x8] sm:$0xff] %v327
                %v329 = vld [vmem:[%s323 + $0x20] sm:$0xff]
                %330 = vst [vmem:[%s324 + $0x10] sm:$0xff] %v329
                %v331 = vld [vmem:[%s323 + $0x28] sm:$0xff]
                %332 = vst [vmem:[%s324 + $0x18] sm:$0xff] %v331
              $region57: #{tpu_custom_call.1} parent=51 // loop_footer
                %s322 = sadd.s32 1, %s318
              $region58: #{tpu_custom_call.1} parent=51 // loop_footer_branch
                %317 = sbr.rel target = $region54
              $region59: #{tpu_custom_call.1} parent=51 // loop_exit
                _
            $region52: #{tpu_custom_call.1} parent=47 // pred_fallthru
              _
            // Predicated region
            $region60: #{tpu_custom_call.1} parent=47 // pred_check
              _
            $region61: #{tpu_custom_call.1} parent=47 // pred_check_branch
              %334 = sbr.rel target = $region63
            $region62: #{tpu_custom_call.1} parent=47 // pred_region
              _
            $region63: #{tpu_custom_call.1} parent=47 // pred_fallthru
              _
          $region48: #{tpu_custom_call.1} parent=43 // pred_fallthru
            _
          %335 = vnop
        $region44: #{tpu_custom_call.1} parent=39 // pred_fallthru
          _
      $region40: #{tpu_custom_call.1} parent=5 // pred_fallthru
        _
      %p336 = scmp.le.s32.totalorder 1, %s22
      %p337 = scmp.lt.s32.totalorder %s22, 3
      %p338 = pnand %p336, %p337
      %p339 = pneg %p338
      // Predicated region
      $region64: #{tpu_custom_call.1} parent=5 // pred_check
        _
      $region65: #{tpu_custom_call.1} parent=5 // pred_check_branch
        %341 = sbr.rel (%p338) target = $region67
      $region66: #{tpu_custom_call.1} parent=5 // pred_region
        %s342 = ssub.s32 %s22, 1
        %s343 = sand.u32 %s49, 1
        %s344 = sand.u32 %s49, 1
        %s345 = smul.addr %s344, 32
        %s346 = scalar_lea.vmem [#allocation4], %s345
        // Predicated region
        $region68: #{tpu_custom_call.1} parent=66 // pred_check
          %p347 = pneg %p62
        $region69: #{tpu_custom_call.1} parent=66 // pred_check_branch
          %349 = sbr.rel (%p347) target = $region71
        $region70: #{tpu_custom_call.1} parent=66 // pred_region
          _
        $region71: #{tpu_custom_call.1} parent=66 // pred_fallthru
          _
        // Predicated region
        $region72: #{tpu_custom_call.1} parent=66 // pred_check
          %p350 = pneg %p193
        $region73: #{tpu_custom_call.1} parent=66 // pred_check_branch
          %352 = sbr.rel (%p350) target = $region75
        $region74: #{tpu_custom_call.1} parent=66 // pred_region
          %353 = dma.done [#allocation6], 8192
        $region75: #{tpu_custom_call.1} parent=66 // pred_fallthru
          _
        %s354 = sand.u32 %s49, 1
        %s355 = sand.u32 %s49, 1
        %s356 = smul.addr %s355, 32
        %s357 = scalar_lea.vmem [#allocation4], %s356
        %p358 = pneg %p62
        %p359 = pneg %p59
        %p360 = scmp.lt.s32.totalorder %s31, 0
        %s361 = scalar_select %p360, %s31, 0
        %s362 = smul.addr %s361, 2
        %s363 = scalar_lea.vmem %s1, %s362
        %p364 = pneg %p88
        %p365 = pneg %p85
        %p366 = pneg %p109
        %p367 = pneg %p106
        %p368 = pneg %p130
        %p369 = pneg %p127
        %p370 = pneg %p151
        %p371 = pneg %p148
        %p372 = pneg %p172
        %p373 = pneg %p169
        %p374 = pneg %p193
        %p375 = pneg %p190
        %p376 = pneg %p221
        %p377 = pneg %p218
        %s378 = sand.u32 %s208, 1
        %s379 = scalar_lea.sflag [#allocation7], %s378
        %s380 = sand.u32 %s208, 1
        %s381 = smul.addr %s380, 32
        %s382 = scalar_lea.vmem [#allocation8], %s381
        %p383 = pneg %p249
        %p384 = pneg %p246
        %s385 = sand.u32 %s236, 1
        %s386 = scalar_lea.sflag [#allocation10], %s385
        %s387 = sand.u32 %s236, 1
        %s388 = smul.addr %s387, 32
        %s389 = scalar_lea.vmem [#allocation9], %s388
        %s390 = smul.u32 2, %s31
        %p391 = scmp.lt.s32.totalorder %s31, 0
        %s392 = scalar_select %p391, %s31, 0
        %s393 = smul.addr %s392, 2
        %s394 = scalar_lea.vmem %s1, %s393
        %s395 = smul.u32 2, %s31
        %s396 = smul.u32 2, %s31
        %p397 = scmp.eq.s32.totalorder %s32, 0
        // Predicated region
        $region76: #{tpu_custom_call.1} parent=66 // pred_check
          %p398 = pneg %p397
        $region77: #{tpu_custom_call.1} parent=66 // pred_check_branch
          %400 = sbr.rel (%p398) target = $region79
        $region78: #{tpu_custom_call.1} parent=66 // pred_region
          %v401 = vld [vmem:[%s394] sm:$0x3]
          %vm402 = vcmask 254976
          %403 = vst.msk [vmem:[#allocation2] sm:$0x3] %vm402, %v401
        $region79: #{tpu_custom_call.1} parent=66 // pred_fallthru
          _
        %v404 = vld [vmem:[%s346] sm:$0xff]
        %v405 = vld [vmem:[%s346 + $0x8] sm:$0xff]
        %v406 = vld [vmem:[%s2] sm:$0xff]
        %v407 = vld [vmem:[%s2 + $0x8] sm:$0xff]
        %v408 = vld [vmem:[%s2 + $0x10] sm:$0xff]
        %v409 = vld [vmem:[%s2 + $0x18] sm:$0xff]
        %v410 = vld [vmem:[%s2 + $0x20] sm:$0xff]
        %v411 = vld [vmem:[%s2 + $0x28] sm:$0xff]
        %v412 = vld [vmem:[%s2 + $0x30] sm:$0xff]
        %v413 = vld [vmem:[%s2 + $0x38] sm:$0xff]
        %v414 = vld [vmem:[%s2 + $0x40] sm:$0xff]
        %v415 = vld [vmem:[%s2 + $0x48] sm:$0xff]
        %v416 = vld [vmem:[%s2 + $0x50] sm:$0xff]
        %v417 = vld [vmem:[%s2 + $0x58] sm:$0xff]
        %v418 = vld [vmem:[%s2 + $0x60] sm:$0xff]
        %v419 = vld [vmem:[%s2 + $0x68] sm:$0xff]
        %v420 = vld [vmem:[%s2 + $0x70] sm:$0xff]
        %v421 = vld [vmem:[%s2 + $0x78] sm:$0xff]
        %v422 = vld [vmem:[%s2 + $0x80] sm:$0xff]
        %v423 = vld [vmem:[%s2 + $0x88] sm:$0xff]
        %v424 = vld [vmem:[%s2 + $0x90] sm:$0xff]
        %v425 = vld [vmem:[%s2 + $0x98] sm:$0xff]
        %v426 = vld [vmem:[%s2 + $0xa0] sm:$0xff]
        %v427 = vld [vmem:[%s2 + $0xa8] sm:$0xff]
        %v428 = vld [vmem:[%s2 + $0xb0] sm:$0xff]
        %v429 = vld [vmem:[%s2 + $0xb8] sm:$0xff]
        %v430 = vld [vmem:[%s2 + $0xc0] sm:$0xff]
        %v431 = vld [vmem:[%s2 + $0xc8] sm:$0xff]
        %v432 = vld [vmem:[%s2 + $0xd0] sm:$0xff]
        %v433 = vld [vmem:[%s2 + $0xd8] sm:$0xff]
        %v434 = vld [vmem:[%s2 + $0xe0] sm:$0xff]
        %v435 = vld [vmem:[%s2 + $0xe8] sm:$0xff]
        %v436 = vld [vmem:[%s2 + $0xf0] sm:$0xff]
        %v437 = vld [vmem:[%s2 + $0xf8] sm:$0xff]
        %v438 = vld [vmem:[%s3] sm:$0x1]
        %v440 = vlaneseq
        %v441 = vshrl.u32 %v440, 7
        %v442 = vsub.s32 0, %v441
        %v443 = vrot.slane %v438, %v442
        %445 = vmatprep.subr.mxu0 0.0
        %446 = vmatpush1.msra.mxu0 %v421
        %447 = vmatprep.subr.mxu0 0.0
        %448 = vmatpush1.msra.mxu0 %v420
        %449 = vmatprep.subr.mxu0 0.0
        %450 = vmatpush1.msra.mxu0 %v419
        %451 = vmatprep.subr.mxu0 0.0
        %452 = vmatpush1.msra.mxu0 %v418
        %453 = vmatprep.subr.mxu0 0.0
        %454 = vmatpush1.msra.mxu0 %v417
        %455 = vmatprep.subr.mxu0 0.0
        %456 = vmatpush1.msra.mxu0 %v416
        %457 = vmatprep.subr.mxu0 0.0
        %458 = vmatpush1.msra.mxu0 %v415
        %459 = vmatprep.subr.mxu0 0.0
        %460 = vmatpush1.msra.mxu0 %v414
        %461 = vmatprep.subr.mxu0 0.0
        %462 = vmatpush1.msra.mxu0 %v413
        %463 = vmatprep.subr.mxu0 0.0
        %464 = vmatpush1.msra.mxu0 %v412
        %465 = vmatprep.subr.mxu0 0.0
        %466 = vmatpush1.msra.mxu0 %v411
        %467 = vmatprep.subr.mxu0 0.0
        %468 = vmatpush1.msra.mxu0 %v410
        %469 = vmatprep.subr.mxu0 0.0
        %470 = vmatpush1.msra.mxu0 %v409
        %471 = vmatprep.subr.mxu0 0.0
        %472 = vmatpush1.msra.mxu0 %v408
        %473 = vmatprep.subr.mxu0 0.0
        %474 = vmatpush1.msra.mxu0 %v407
        %475 = vmatprep.subr.mxu0 0.0
        %476 = vmatpush1.msra.mxu0 %v406
        %477 = vmatprep.subr.mxu0 0.0
        %478 = vmatpush2.msra.mxu0 %v437
        %479 = vmatprep.subr.mxu0 0.0
        %480 = vmatpush2.msra.mxu0 %v436
        %481 = vmatprep.subr.mxu0 0.0
        %482 = vmatpush2.msra.mxu0 %v435
        %483 = vmatprep.subr.mxu0 0.0
        %484 = vmatpush2.msra.mxu0 %v434
        %485 = vmatprep.subr.mxu0 0.0
        %486 = vmatpush2.msra.mxu0 %v433
        %487 = vmatprep.subr.mxu0 0.0
        %488 = vmatpush2.msra.mxu0 %v432
        %489 = vmatprep.subr.mxu0 0.0
        %490 = vmatpush2.msra.mxu0 %v431
        %491 = vmatprep.subr.mxu0 0.0
        %492 = vmatpush2.msra.mxu0 %v430
        %493 = vmatprep.subr.mxu0 0.0
        %494 = vmatpush2.msra.mxu0 %v429
        %495 = vmatprep.subr.mxu0 0.0
        %496 = vmatpush2.msra.mxu0 %v428
        %497 = vmatprep.subr.mxu0 0.0
        %498 = vmatpush2.msra.mxu0 %v427
        %499 = vmatprep.subr.mxu0 0.0
        %500 = vmatpush2.msra.mxu0 %v426
        %501 = vmatprep.subr.mxu0 0.0
        %502 = vmatpush2.msra.mxu0 %v425
        %503 = vmatprep.subr.mxu0 0.0
        %504 = vmatpush2.msra.mxu0 %v424
        %505 = vmatprep.subr.mxu0 0.0
        %506 = vmatpush2.msra.mxu0 %v423
        %507 = vmatprep.subr.mxu0 0.0
        %508 = vmatpush2.msra.mxu0 %v422
        %509 = vmatprep.mubr.f32.mxu0 %v405
        %510 = vmatmul.mubr.f32.gmra.mxu0 %v404
        %v511 = vpop.f32.mrf.mxu0
        %v512 = vadd.f32 %v443, %v511
        %v513 = vpop.f32.mrf.mxu0
        %514 = vdwg.mxu0
        %vm515 = vcmask 261120
        %516 = vst.msk [vmem:[#allocation3] sm:$0xff] %vm515, %v512
        %s517 = scalar_lea.vmem %s346, 16 [#allocation4]
        %v518 = vld [vmem:[%s517] sm:$0xff]
        %v519 = vld [vmem:[%s517 + $0x8] sm:$0xff]
        %v520 = vld [vmem:[%s2] sm:$0xff]
        %v521 = vld [vmem:[%s2 + $0x8] sm:$0xff]
        %v522 = vld [vmem:[%s2 + $0x10] sm:$0xff]
        %v523 = vld [vmem:[%s2 + $0x18] sm:$0xff]
        %v524 = vld [vmem:[%s2 + $0x20] sm:$0xff]
        %v525 = vld [vmem:[%s2 + $0x28] sm:$0xff]
        %v526 = vld [vmem:[%s2 + $0x30] sm:$0xff]
        %v527 = vld [vmem:[%s2 + $0x38] sm:$0xff]
        %v528 = vld [vmem:[%s2 + $0x40] sm:$0xff]
        %v529 = vld [vmem:[%s2 + $0x48] sm:$0xff]
        %v530 = vld [vmem:[%s2 + $0x50] sm:$0xff]
        %v531 = vld [vmem:[%s2 + $0x58] sm:$0xff]
        %v532 = vld [vmem:[%s2 + $0x60] sm:$0xff]
        %v533 = vld [vmem:[%s2 + $0x68] sm:$0xff]
        %v534 = vld [vmem:[%s2 + $0x70] sm:$0xff]
        %v535 = vld [vmem:[%s2 + $0x78] sm:$0xff]
        %v536 = vld [vmem:[%s2 + $0x80] sm:$0xff]
        %v537 = vld [vmem:[%s2 + $0x88] sm:$0xff]
        %v538 = vld [vmem:[%s2 + $0x90] sm:$0xff]
        %v539 = vld [vmem:[%s2 + $0x98] sm:$0xff]
        %v540 = vld [vmem:[%s2 + $0xa0] sm:$0xff]
        %v541 = vld [vmem:[%s2 + $0xa8] sm:$0xff]
        %v542 = vld [vmem:[%s2 + $0xb0] sm:$0xff]
        %v543 = vld [vmem:[%s2 + $0xb8] sm:$0xff]
        %v544 = vld [vmem:[%s2 + $0xc0] sm:$0xff]
        %v545 = vld [vmem:[%s2 + $0xc8] sm:$0xff]
        %v546 = vld [vmem:[%s2 + $0xd0] sm:$0xff]
        %v547 = vld [vmem:[%s2 + $0xd8] sm:$0xff]
        %v548 = vld [vmem:[%s2 + $0xe0] sm:$0xff]
        %v549 = vld [vmem:[%s2 + $0xe8] sm:$0xff]
        %v550 = vld [vmem:[%s2 + $0xf0] sm:$0xff]
        %v551 = vld [vmem:[%s2 + $0xf8] sm:$0xff]
        %v552 = vld [vmem:[%s3] sm:$0x1]
        %v554 = vlaneseq
        %v555 = vshrl.u32 %v554, 7
        %v556 = vsub.s32 0, %v555
        %v557 = vrot.slane %v552, %v556
        %559 = vmatprep.subr.mxu0 0.0
        %560 = vmatpush1.msra.mxu0 %v535
        %561 = vmatprep.subr.mxu0 0.0
        %562 = vmatpush1.msra.mxu0 %v534
        %563 = vmatprep.subr.mxu0 0.0
        %564 = vmatpush1.msra.mxu0 %v533
        %565 = vmatprep.subr.mxu0 0.0
        %566 = vmatpush1.msra.mxu0 %v532
        %567 = vmatprep.subr.mxu0 0.0
        %568 = vmatpush1.msra.mxu0 %v531
        %569 = vmatprep.subr.mxu0 0.0
        %570 = vmatpush1.msra.mxu0 %v530
        %571 = vmatprep.subr.mxu0 0.0
        %572 = vmatpush1.msra.mxu0 %v529
        %573 = vmatprep.subr.mxu0 0.0
        %574 = vmatpush1.msra.mxu0 %v528
        %575 = vmatprep.subr.mxu0 0.0
        %576 = vmatpush1.msra.mxu0 %v527
        %577 = vmatprep.subr.mxu0 0.0
        %578 = vmatpush1.msra.mxu0 %v526
        %579 = vmatprep.subr.mxu0 0.0
        %580 = vmatpush1.msra.mxu0 %v525
        %581 = vmatprep.subr.mxu0 0.0
        %582 = vmatpush1.msra.mxu0 %v524
        %583 = vmatprep.subr.mxu0 0.0
        %584 = vmatpush1.msra.mxu0 %v523
        %585 = vmatprep.subr.mxu0 0.0
        %586 = vmatpush1.msra.mxu0 %v522
        %587 = vmatprep.subr.mxu0 0.0
        %588 = vmatpush1.msra.mxu0 %v521
        %589 = vmatprep.subr.mxu0 0.0
        %590 = vmatpush1.msra.mxu0 %v520
        %591 = vmatprep.subr.mxu0 0.0
        %592 = vmatpush2.msra.mxu0 %v551
        %593 = vmatprep.subr.mxu0 0.0
        %594 = vmatpush2.msra.mxu0 %v550
        %595 = vmatprep.subr.mxu0 0.0
        %596 = vmatpush2.msra.mxu0 %v549
        %597 = vmatprep.subr.mxu0 0.0
        %598 = vmatpush2.msra.mxu0 %v548
        %599 = vmatprep.subr.mxu0 0.0
        %600 = vmatpush2.msra.mxu0 %v547
        %601 = vmatprep.subr.mxu0 0.0
        %602 = vmatpush2.msra.mxu0 %v546
        %603 = vmatprep.subr.mxu0 0.0
        %604 = vmatpush2.msra.mxu0 %v545
        %605 = vmatprep.subr.mxu0 0.0
        %606 = vmatpush2.msra.mxu0 %v544
        %607 = vmatprep.subr.mxu0 0.0
        %608 = vmatpush2.msra.mxu0 %v543
        %609 = vmatprep.subr.mxu0 0.0
        %610 = vmatpush2.msra.mxu0 %v542
        %611 = vmatprep.subr.mxu0 0.0
        %612 = vmatpush2.msra.mxu0 %v541
        %613 = vmatprep.subr.mxu0 0.0
        %614 = vmatpush2.msra.mxu0 %v540
        %615 = vmatprep.subr.mxu0 0.0
        %616 = vmatpush2.msra.mxu0 %v539
        %617 = vmatprep.subr.mxu0 0.0
        %618 = vmatpush2.msra.mxu0 %v538
        %619 = vmatprep.subr.mxu0 0.0
        %620 = vmatpush2.msra.mxu0 %v537
        %621 = vmatprep.subr.mxu0 0.0
        %622 = vmatpush2.msra.mxu0 %v536
        %623 = vmatprep.mubr.f32.mxu0 %v519
        %624 = vmatmul.mubr.f32.gmra.mxu0 %v518
        %v625 = vpop.f32.mrf.mxu0
        %v626 = vadd.f32 %v557, %v625
        %v627 = vpop.f32.mrf.mxu0
        %628 = vdwg.mxu0
        %s629 = scalar_lea.vmem [#allocation3], 8
        %630 = vst.msk [vmem:[%s629] sm:$0xff] %vm515, %v626
        %v631 = vld [vmem:[#allocation2] sm:$0x3]
        %v632 = vld [vmem:[#allocation3] sm:$0x1]
        %v633 = vld [vmem:[%s629] sm:$0x1]
        %v635 = vrot.slane %v633, 7
        %vm637 = vcmask 1040384
        %v638 = vsel %vm637, %v632, %v635
        %v639 = vld [vmem:[%s4] sm:$0xff]
        %v640 = vld [vmem:[%s4 + $0x8] sm:$0xff]
        %v641 = vld [vmem:[%s4 + $0x10] sm:$0xff]
        %v642 = vld [vmem:[%s4 + $0x18] sm:$0xff]
        %v644 = vsel %vm515, %v631, 0
        %646 = vmatprep.subr.mxu0 0.0
        %647 = vmatpush1.msra.mxu0 0.0
        %648 = vmatprep.subr.mxu0 0.0
        %649 = vmatpush1.msra.mxu0 0.0
        %650 = vmatprep.subr.mxu0 0.0
        %651 = vmatpush1.msra.mxu0 0.0
        %652 = vmatprep.subr.mxu0 0.0
        %653 = vmatpush1.msra.mxu0 0.0
        %654 = vmatprep.subr.mxu0 0.0
        %655 = vmatpush1.msra.mxu0 0.0
        %656 = vmatprep.subr.mxu0 0.0
        %657 = vmatpush1.msra.mxu0 0.0
        %658 = vmatprep.subr.mxu0 0.0
        %659 = vmatpush1.msra.mxu0 0.0
        %660 = vmatprep.subr.mxu0 0.0
        %661 = vmatpush1.msra.mxu0 0.0
        %662 = vmatprep.subr.mxu0 0.0
        %663 = vmatpush1.msra.mxu0 0.0
        %664 = vmatprep.subr.mxu0 0.0
        %665 = vmatpush1.msra.mxu0 0.0
        %666 = vmatprep.subr.mxu0 0.0
        %667 = vmatpush1.msra.mxu0 0.0
        %668 = vmatprep.subr.mxu0 0.0
        %669 = vmatpush1.msra.mxu0 0.0
        %670 = vmatprep.subr.mxu0 0.0
        %671 = vmatpush1.msra.mxu0 %v642
        %672 = vmatprep.subr.mxu0 0.0
        %673 = vmatpush1.msra.mxu0 %v641
        %674 = vmatprep.subr.mxu0 0.0
        %675 = vmatpush1.msra.mxu0 %v640
        %676 = vmatprep.subr.mxu0 0.0
        %677 = vmatpush1.msra.mxu0 %v639
        %678 = vmatprep.subr.mxu0 0.0
        %679 = vmatpush2.msra.mxu0 0.0
        %680 = vmatprep.subr.mxu0 0.0
        %681 = vmatpush2.msra.mxu0 0.0
        %682 = vmatprep.subr.mxu0 0.0
        %683 = vmatpush2.msra.mxu0 0.0
        %684 = vmatprep.subr.mxu0 0.0
        %685 = vmatpush2.msra.mxu0 0.0
        %686 = vmatprep.subr.mxu0 0.0
        %687 = vmatpush2.msra.mxu0 0.0
        %688 = vmatprep.subr.mxu0 0.0
        %689 = vmatpush2.msra.mxu0 0.0
        %690 = vmatprep.subr.mxu0 0.0
        %691 = vmatpush2.msra.mxu0 0.0
        %692 = vmatprep.subr.mxu0 0.0
        %693 = vmatpush2.msra.mxu0 0.0
        %694 = vmatprep.subr.mxu0 0.0
        %695 = vmatpush2.msra.mxu0 0.0
        %696 = vmatprep.subr.mxu0 0.0
        %697 = vmatpush2.msra.mxu0 0.0
        %698 = vmatprep.subr.mxu0 0.0
        %699 = vmatpush2.msra.mxu0 0.0
        %700 = vmatprep.subr.mxu0 0.0
        %701 = vmatpush2.msra.mxu0 0.0
        %702 = vmatprep.subr.mxu0 0.0
        %703 = vmatpush2.msra.mxu0 0.0
        %704 = vmatprep.subr.mxu0 0.0
        %705 = vmatpush2.msra.mxu0 0.0
        %706 = vmatprep.subr.mxu0 0.0
        %707 = vmatpush2.msra.mxu0 0.0
        %708 = vmatprep.subr.mxu0 0.0
        %709 = vmatpush2.msra.mxu0 0.0
        %710 = vmatprep.mubr.f32.mxu0 0.0
        %711 = vmatmul.mubr.f32.gmra.mxu0 %v644
        %v712 = vpop.f32.mrf.mxu0
        %v713 = vadd.f32 0.0, %v712
        %v714 = vpop.f32.mrf.mxu0
        %715 = vdwg.mxu0
        %v716 = vadd.f32 %v638, %v713
        %v717 = vtanh.pop %v716
        %vm718 = vcmask 253952
        %719 = vst.msk [vmem:[#allocation3] sm:$0x1] %vm718, %v717
        %vm720 = vcmask 254977
        %721 = vst.msk [vmem:[%s629 - $0x1] sm:$0x2] %vm720, %v717
        %v722 = vld [vmem:[#allocation3 + $0x1] sm:$0x1]
        %v723 = vld [vmem:[%s629 + $0x1] sm:$0x1]
        %v725 = vrot.slane %v723, 7
        %v727 = vsel %vm637, %v722, %v725
        %v728 = vld [vmem:[%s4] sm:$0xff]
        %v729 = vld [vmem:[%s4 + $0x8] sm:$0xff]
        %v730 = vld [vmem:[%s4 + $0x10] sm:$0xff]
        %v731 = vld [vmem:[%s4 + $0x18] sm:$0xff]
        %v733 = vsel %vm515, %v717, 0
        %735 = vmatprep.subr.mxu0 0.0
        %736 = vmatpush1.msra.mxu0 0.0
        %737 = vmatprep.subr.mxu0 0.0
        %738 = vmatpush1.msra.mxu0 0.0
        %739 = vmatprep.subr.mxu0 0.0
        %740 = vmatpush1.msra.mxu0 0.0
        %741 = vmatprep.subr.mxu0 0.0
        %742 = vmatpush1.msra.mxu0 0.0
        %743 = vmatprep.subr.mxu0 0.0
        %744 = vmatpush1.msra.mxu0 0.0
        %745 = vmatprep.subr.mxu0 0.0
        %746 = vmatpush1.msra.mxu0 0.0
        %747 = vmatprep.subr.mxu0 0.0
        %748 = vmatpush1.msra.mxu0 0.0
        %749 = vmatprep.subr.mxu0 0.0
        %750 = vmatpush1.msra.mxu0 0.0
        %751 = vmatprep.subr.mxu0 0.0
        %752 = vmatpush1.msra.mxu0 0.0
        %753 = vmatprep.subr.mxu0 0.0
        %754 = vmatpush1.msra.mxu0 0.0
        %755 = vmatprep.subr.mxu0 0.0
        %756 = vmatpush1.msra.mxu0 0.0
        %757 = vmatprep.subr.mxu0 0.0
        %758 = vmatpush1.msra.mxu0 0.0
        %759 = vmatprep.subr.mxu0 0.0
        %760 = vmatpush1.msra.mxu0 %v731
        %761 = vmatprep.subr.mxu0 0.0
        %762 = vmatpush1.msra.mxu0 %v730
        %763 = vmatprep.subr.mxu0 0.0
        %764 = vmatpush1.msra.mxu0 %v729
        %765 = vmatprep.subr.mxu0 0.0
        %766 = vmatpush1.msra.mxu0 %v728
        %767 = vmatprep.subr.mxu0 0.0
        %768 = vmatpush2.msra.mxu0 0.0
        %769 = vmatprep.subr.mxu0 0.0
        %770 = vmatpush2.msra.mxu0 0.0
        %771 = vmatprep.subr.mxu0 0.0
        %772 = vmatpush2.msra.mxu0 0.0
        %773 = vmatprep.subr.mxu0 0.0
        %774 = vmatpush2.msra.mxu0 0.0
        %775 = vmatprep.subr.mxu0 0.0
        %776 = vmatpush2.msra.mxu0 0.0
        %777 = vmatprep.subr.mxu0 0.0
        %778 = vmatpush2.msra.mxu0 0.0
        %779 = vmatprep.subr.mxu0 0.0
        %780 = vmatpush2.msra.mxu0 0.0
        %781 = vmatprep.subr.mxu0 0.0
        %782 = vmatpush2.msra.mxu0 0.0
        %783 = vmatprep.subr.mxu0 0.0
        %784 = vmatpush2.msra.mxu0 0.0
        %785 = vmatprep.subr.mxu0 0.0
        %786 = vmatpush2.msra.mxu0 0.0
        %787 = vmatprep.subr.mxu0 0.0
        %788 = vmatpush2.msra.mxu0 0.0
        %789 = vmatprep.subr.mxu0 0.0
        %790 = vmatpush2.msra.mxu0 0.0
        %791 = vmatprep.subr.mxu0 0.0
        %792 = vmatpush2.msra.mxu0 0.0
        %793 = vmatprep.subr.mxu0 0.0
        %794 = vmatpush2.msra.mxu0 0.0
        %795 = vmatprep.subr.mxu0 0.0
        %796 = vmatpush2.msra.mxu0 0.0
        %797 = vmatprep.subr.mxu0 0.0
        %798 = vmatpush2.msra.mxu0 0.0
        %799 = vmatprep.mubr.f32.mxu0 0.0
        %800 = vmatmul.mubr.f32.gmra.mxu0 %v733
        %v801 = vpop.f32.mrf.mxu0
        %v802 = vadd.f32 0.0, %v801
        %v803 = vpop.f32.mrf.mxu0
        %804 = vdwg.mxu0
        %v805 = vadd.f32 %v727, %v802
        %v806 = vtanh.pop %v805
        %807 = vst.msk [vmem:[#allocation3 + $0x1] sm:$0x1] %vm718, %v806
        %808 = vst.msk [vmem:[%s629] sm:$0x2] %vm720, %v806
        %v809 = vld [vmem:[#allocation3 + $0x2] sm:$0x1]
        %v810 = vld [vmem:[%s629 + $0x2] sm:$0x1]
        %v812 = vrot.slane %v810, 7
        %v814 = vsel %vm637, %v809, %v812
        %v815 = vld [vmem:[%s4] sm:$0xff]
        %v816 = vld [vmem:[%s4 + $0x8] sm:$0xff]
        %v817 = vld [vmem:[%s4 + $0x10] sm:$0xff]
        %v818 = vld [vmem:[%s4 + $0x18] sm:$0xff]
        %v820 = vsel %vm515, %v806, 0
        %822 = vmatprep.subr.mxu0 0.0
        %823 = vmatpush1.msra.mxu0 0.0
        %824 = vmatprep.subr.mxu0 0.0
        %825 = vmatpush1.msra.mxu0 0.0
        %826 = vmatprep.subr.mxu0 0.0
        %827 = vmatpush1.msra.mxu0 0.0
        %828 = vmatprep.subr.mxu0 0.0
        %829 = vmatpush1.msra.mxu0 0.0
        %830 = vmatprep.subr.mxu0 0.0
        %831 = vmatpush1.msra.mxu0 0.0
        %832 = vmatprep.subr.mxu0 0.0
        %833 = vmatpush1.msra.mxu0 0.0
        %834 = vmatprep.subr.mxu0 0.0
        %835 = vmatpush1.msra.mxu0 0.0
        %836 = vmatprep.subr.mxu0 0.0
        %837 = vmatpush1.msra.mxu0 0.0
        %838 = vmatprep.subr.mxu0 0.0
        %839 = vmatpush1.msra.mxu0 0.0
        %840 = vmatprep.subr.mxu0 0.0
        %841 = vmatpush1.msra.mxu0 0.0
        %842 = vmatprep.subr.mxu0 0.0
        %843 = vmatpush1.msra.mxu0 0.0
        %844 = vmatprep.subr.mxu0 0.0
        %845 = vmatpush1.msra.mxu0 0.0
        %846 = vmatprep.subr.mxu0 0.0
        %847 = vmatpush1.msra.mxu0 %v818
        %848 = vmatprep.subr.mxu0 0.0
        %849 = vmatpush1.msra.mxu0 %v817
        %850 = vmatprep.subr.mxu0 0.0
        %851 = vmatpush1.msra.mxu0 %v816
        %852 = vmatprep.subr.mxu0 0.0
        %853 = vmatpush1.msra.mxu0 %v815
        %854 = vmatprep.subr.mxu0 0.0
        %855 = vmatpush2.msra.mxu0 0.0
        %856 = vmatprep.subr.mxu0 0.0
        %857 = vmatpush2.msra.mxu0 0.0
        %858 = vmatprep.subr.mxu0 0.0
        %859 = vmatpush2.msra.mxu0 0.0
        %860 = vmatprep.subr.mxu0 0.0
        %861 = vmatpush2.msra.mxu0 0.0
        %862 = vmatprep.subr.mxu0 0.0
        %863 = vmatpush2.msra.mxu0 0.0
        %864 = vmatprep.subr.mxu0 0.0
        %865 = vmatpush2.msra.mxu0 0.0
        %866 = vmatprep.subr.mxu0 0.0
        %867 = vmatpush2.msra.mxu0 0.0
        %868 = vmatprep.subr.mxu0 0.0
        %869 = vmatpush2.msra.mxu0 0.0
        %870 = vmatprep.subr.mxu0 0.0
        %871 = vmatpush2.msra.mxu0 0.0
        %872 = vmatprep.subr.mxu0 0.0
        %873 = vmatpush2.msra.mxu0 0.0
        %874 = vmatprep.subr.mxu0 0.0
        %875 = vmatpush2.msra.mxu0 0.0
        %876 = vmatprep.subr.mxu0 0.0
        %877 = vmatpush2.msra.mxu0 0.0
        %878 = vmatprep.subr.mxu0 0.0
        %879 = vmatpush2.msra.mxu0 0.0
        %880 = vmatprep.subr.mxu0 0.0
        %881 = vmatpush2.msra.mxu0 0.0
        %882 = vmatprep.subr.mxu0 0.0
        %883 = vmatpush2.msra.mxu0 0.0
        %884 = vmatprep.subr.mxu0 0.0
        %885 = vmatpush2.msra.mxu0 0.0
        %886 = vmatprep.mubr.f32.mxu0 0.0
        %887 = vmatmul.mubr.f32.gmra.mxu0 %v820
        %v888 = vpop.f32.mrf.mxu0
        %v889 = vadd.f32 0.0, %v888
        %v890 = vpop.f32.mrf.mxu0
        %891 = vdwg.mxu0
        %v892 = vadd.f32 %v814, %v889
        %v893 = vtanh.pop %v892
        %894 = vst.msk [vmem:[#allocation3 + $0x2] sm:$0x1] %vm718, %v893
        %895 = vst.msk [vmem:[%s629 + $0x1] sm:$0x2] %vm720, %v893
        %v896 = vld [vmem:[#allocation3 + $0x3] sm:$0x1]
        %v897 = vld [vmem:[%s629 + $0x3] sm:$0x1]
        %v899 = vrot.slane %v897, 7
        %v901 = vsel %vm637, %v896, %v899
        %v902 = vld [vmem:[%s4] sm:$0xff]
        %v903 = vld [vmem:[%s4 + $0x8] sm:$0xff]
        %v904 = vld [vmem:[%s4 + $0x10] sm:$0xff]
        %v905 = vld [vmem:[%s4 + $0x18] sm:$0xff]
        %v907 = vsel %vm515, %v893, 0
        %909 = vmatprep.subr.mxu0 0.0
        %910 = vmatpush1.msra.mxu0 0.0
        %911 = vmatprep.subr.mxu0 0.0
        %912 = vmatpush1.msra.mxu0 0.0
        %913 = vmatprep.subr.mxu0 0.0
        %914 = vmatpush1.msra.mxu0 0.0
        %915 = vmatprep.subr.mxu0 0.0
        %916 = vmatpush1.msra.mxu0 0.0
        %917 = vmatprep.subr.mxu0 0.0
        %918 = vmatpush1.msra.mxu0 0.0
        %919 = vmatprep.subr.mxu0 0.0
        %920 = vmatpush1.msra.mxu0 0.0
        %921 = vmatprep.subr.mxu0 0.0
        %922 = vmatpush1.msra.mxu0 0.0
        %923 = vmatprep.subr.mxu0 0.0
        %924 = vmatpush1.msra.mxu0 0.0
        %925 = vmatprep.subr.mxu0 0.0
        %926 = vmatpush1.msra.mxu0 0.0
        %927 = vmatprep.subr.mxu0 0.0
        %928 = vmatpush1.msra.mxu0 0.0
        %929 = vmatprep.subr.mxu0 0.0
        %930 = vmatpush1.msra.mxu0 0.0
        %931 = vmatprep.subr.mxu0 0.0
        %932 = vmatpush1.msra.mxu0 0.0
        %933 = vmatprep.subr.mxu0 0.0
        %934 = vmatpush1.msra.mxu0 %v905
        %935 = vmatprep.subr.mxu0 0.0
        %936 = vmatpush1.msra.mxu0 %v904
        %937 = vmatprep.subr.mxu0 0.0
        %938 = vmatpush1.msra.mxu0 %v903
        %939 = vmatprep.subr.mxu0 0.0
        %940 = vmatpush1.msra.mxu0 %v902
        %941 = vmatprep.subr.mxu0 0.0
        %942 = vmatpush2.msra.mxu0 0.0
        %943 = vmatprep.subr.mxu0 0.0
        %944 = vmatpush2.msra.mxu0 0.0
        %945 = vmatprep.subr.mxu0 0.0
        %946 = vmatpush2.msra.mxu0 0.0
        %947 = vmatprep.subr.mxu0 0.0
        %948 = vmatpush2.msra.mxu0 0.0
        %949 = vmatprep.subr.mxu0 0.0
        %950 = vmatpush2.msra.mxu0 0.0
        %951 = vmatprep.subr.mxu0 0.0
        %952 = vmatpush2.msra.mxu0 0.0
        %953 = vmatprep.subr.mxu0 0.0
        %954 = vmatpush2.msra.mxu0 0.0
        %955 = vmatprep.subr.mxu0 0.0
        %956 = vmatpush2.msra.mxu0 0.0
        %957 = vmatprep.subr.mxu0 0.0
        %958 = vmatpush2.msra.mxu0 0.0
        %959 = vmatprep.subr.mxu0 0.0
        %960 = vmatpush2.msra.mxu0 0.0
        %961 = vmatprep.subr.mxu0 0.0
        %962 = vmatpush2.msra.mxu0 0.0
        %963 = vmatprep.subr.mxu0 0.0
        %964 = vmatpush2.msra.mxu0 0.0
        %965 = vmatprep.subr.mxu0 0.0
        %966 = vmatpush2.msra.mxu0 0.0
        %967 = vmatprep.subr.mxu0 0.0
        %968 = vmatpush2.msra.mxu0 0.0
        %969 = vmatprep.subr.mxu0 0.0
        %970 = vmatpush2.msra.mxu0 0.0
        %971 = vmatprep.subr.mxu0 0.0
        %972 = vmatpush2.msra.mxu0 0.0
        %973 = vmatprep.mubr.f32.mxu0 0.0
        %974 = vmatmul.mubr.f32.gmra.mxu0 %v907
        %v975 = vpop.f32.mrf.mxu0
        %v976 = vadd.f32 0.0, %v975
        %v977 = vpop.f32.mrf.mxu0
        %978 = vdwg.mxu0
        %v979 = vadd.f32 %v901, %v976
        %v980 = vtanh.pop %v979
        %981 = vst.msk [vmem:[#allocation3 + $0x3] sm:$0x1] %vm718, %v980
        %982 = vst.msk [vmem:[%s629 + $0x2] sm:$0x2] %vm720, %v980
        %v983 = vld [vmem:[#allocation3 + $0x4] sm:$0x1]
        %v984 = vld [vmem:[%s629 + $0x4] sm:$0x1]
        %v986 = vrot.slane %v984, 7
        %v988 = vsel %vm637, %v983, %v986
        %v989 = vld [vmem:[%s4] sm:$0xff]
        %v990 = vld [vmem:[%s4 + $0x8] sm:$0xff]
        %v991 = vld [vmem:[%s4 + $0x10] sm:$0xff]
        %v992 = vld [vmem:[%s4 + $0x18] sm:$0xff]
        %v994 = vsel %vm515, %v980, 0
        %996 = vmatprep.subr.mxu0 0.0
        %997 = vmatpush1.msra.mxu0 0.0
        %998 = vmatprep.subr.mxu0 0.0
        %999 = vmatpush1.msra.mxu0 0.0
        %1000 = vmatprep.subr.mxu0 0.0
        %1001 = vmatpush1.msra.mxu0 0.0
        %1002 = vmatprep.subr.mxu0 0.0
        %1003 = vmatpush1.msra.mxu0 0.0
        %1004 = vmatprep.subr.mxu0 0.0
        %1005 = vmatpush1.msra.mxu0 0.0
        %1006 = vmatprep.subr.mxu0 0.0
        %1007 = vmatpush1.msra.mxu0 0.0
        %1008 = vmatprep.subr.mxu0 0.0
        %1009 = vmatpush1.msra.mxu0 0.0
        %1010 = vmatprep.subr.mxu0 0.0
        %1011 = vmatpush1.msra.mxu0 0.0
        %1012 = vmatprep.subr.mxu0 0.0
        %1013 = vmatpush1.msra.mxu0 0.0
        %1014 = vmatprep.subr.mxu0 0.0
        %1015 = vmatpush1.msra.mxu0 0.0
        %1016 = vmatprep.subr.mxu0 0.0
        %1017 = vmatpush1.msra.mxu0 0.0
        %1018 = vmatprep.subr.mxu0 0.0
        %1019 = vmatpush1.msra.mxu0 0.0
        %1020 = vmatprep.subr.mxu0 0.0
        %1021 = vmatpush1.msra.mxu0 %v992
        %1022 = vmatprep.subr.mxu0 0.0
        %1023 = vmatpush1.msra.mxu0 %v991
        %1024 = vmatprep.subr.mxu0 0.0
        %1025 = vmatpush1.msra.mxu0 %v990
        %1026 = vmatprep.subr.mxu0 0.0
        %1027 = vmatpush1.msra.mxu0 %v989
        %1028 = vmatprep.subr.mxu0 0.0
        %1029 = vmatpush2.msra.mxu0 0.0
        %1030 = vmatprep.subr.mxu0 0.0
        %1031 = vmatpush2.msra.mxu0 0.0
        %1032 = vmatprep.subr.mxu0 0.0
        %1033 = vmatpush2.msra.mxu0 0.0
        %1034 = vmatprep.subr.mxu0 0.0
        %1035 = vmatpush2.msra.mxu0 0.0
        %1036 = vmatprep.subr.mxu0 0.0
        %1037 = vmatpush2.msra.mxu0 0.0
        %1038 = vmatprep.subr.mxu0 0.0
        %1039 = vmatpush2.msra.mxu0 0.0
        %1040 = vmatprep.subr.mxu0 0.0
        %1041 = vmatpush2.msra.mxu0 0.0
        %1042 = vmatprep.subr.mxu0 0.0
        %1043 = vmatpush2.msra.mxu0 0.0
        %1044 = vmatprep.subr.mxu0 0.0
        %1045 = vmatpush2.msra.mxu0 0.0
        %1046 = vmatprep.subr.mxu0 0.0
        %1047 = vmatpush2.msra.mxu0 0.0
        %1048 = vmatprep.subr.mxu0 0.0
        %1049 = vmatpush2.msra.mxu0 0.0
        %1050 = vmatprep.subr.mxu0 0.0
        %1051 = vmatpush2.msra.mxu0 0.0
        %1052 = vmatprep.subr.mxu0 0.0
        %1053 = vmatpush2.msra.mxu0 0.0
        %1054 = vmatprep.subr.mxu0 0.0
        %1055 = vmatpush2.msra.mxu0 0.0
        %1056 = vmatprep.subr.mxu0 0.0
        %1057 = vmatpush2.msra.mxu0 0.0
        %1058 = vmatprep.subr.mxu0 0.0
        %1059 = vmatpush2.msra.mxu0 0.0
        %1060 = vmatprep.mubr.f32.mxu0 0.0
        %1061 = vmatmul.mubr.f32.gmra.mxu0 %v994
        %v1062 = vpop.f32.mrf.mxu0
        %v1063 = vadd.f32 0.0, %v1062
        %v1064 = vpop.f32.mrf.mxu0
        %1065 = vdwg.mxu0
        %v1066 = vadd.f32 %v988, %v1063
        %v1067 = vtanh.pop %v1066
        %1068 = vst.msk [vmem:[#allocation3 + $0x4] sm:$0x1] %vm718, %v1067
        %1069 = vst.msk [vmem:[%s629 + $0x3] sm:$0x2] %vm720, %v1067
        %v1070 = vld [vmem:[#allocation3 + $0x5] sm:$0x1]
        %v1071 = vld [vmem:[%s629 + $0x5] sm:$0x1]
        %v1073 = vrot.slane %v1071, 7
        %v1075 = vsel %vm637, %v1070, %v1073
        %v1076 = vld [vmem:[%s4] sm:$0xff]
        %v1077 = vld [vmem:[%s4 + $0x8] sm:$0xff]
        %v1078 = vld [vmem:[%s4 + $0x10] sm:$0xff]
        %v1079 = vld [vmem:[%s4 + $0x18] sm:$0xff]
        %v1081 = vsel %vm515, %v1067, 0
        %1083 = vmatprep.subr.mxu0 0.0
        %1084 = vmatpush1.msra.mxu0 0.0
        %1085 = vmatprep.subr.mxu0 0.0
        %1086 = vmatpush1.msra.mxu0 0.0
        %1087 = vmatprep.subr.mxu0 0.0
        %1088 = vmatpush1.msra.mxu0 0.0
        %1089 = vmatprep.subr.mxu0 0.0
        %1090 = vmatpush1.msra.mxu0 0.0
        %1091 = vmatprep.subr.mxu0 0.0
        %1092 = vmatpush1.msra.mxu0 0.0
        %1093 = vmatprep.subr.mxu0 0.0
        %1094 = vmatpush1.msra.mxu0 0.0
        %1095 = vmatprep.subr.mxu0 0.0
        %1096 = vmatpush1.msra.mxu0 0.0
        %1097 = vmatprep.subr.mxu0 0.0
        %1098 = vmatpush1.msra.mxu0 0.0
        %1099 = vmatprep.subr.mxu0 0.0
        %1100 = vmatpush1.msra.mxu0 0.0
        %1101 = vmatprep.subr.mxu0 0.0
        %1102 = vmatpush1.msra.mxu0 0.0
        %1103 = vmatprep.subr.mxu0 0.0
        %1104 = vmatpush1.msra.mxu0 0.0
        %1105 = vmatprep.subr.mxu0 0.0
        %1106 = vmatpush1.msra.mxu0 0.0
        %1107 = vmatprep.subr.mxu0 0.0
        %1108 = vmatpush1.msra.mxu0 %v1079
        %1109 = vmatprep.subr.mxu0 0.0
        %1110 = vmatpush1.msra.mxu0 %v1078
        %1111 = vmatprep.subr.mxu0 0.0
        %1112 = vmatpush1.msra.mxu0 %v1077
        %1113 = vmatprep.subr.mxu0 0.0
        %1114 = vmatpush1.msra.mxu0 %v1076
        %1115 = vmatprep.subr.mxu0 0.0
        %1116 = vmatpush2.msra.mxu0 0.0
        %1117 = vmatprep.subr.mxu0 0.0
        %1118 = vmatpush2.msra.mxu0 0.0
        %1119 = vmatprep.subr.mxu0 0.0
        %1120 = vmatpush2.msra.mxu0 0.0
        %1121 = vmatprep.subr.mxu0 0.0
        %1122 = vmatpush2.msra.mxu0 0.0
        %1123 = vmatprep.subr.mxu0 0.0
        %1124 = vmatpush2.msra.mxu0 0.0
        %1125 = vmatprep.subr.mxu0 0.0
        %1126 = vmatpush2.msra.mxu0 0.0
        %1127 = vmatprep.subr.mxu0 0.0
        %1128 = vmatpush2.msra.mxu0 0.0
        %1129 = vmatprep.subr.mxu0 0.0
        %1130 = vmatpush2.msra.mxu0 0.0
        %1131 = vmatprep.subr.mxu0 0.0
        %1132 = vmatpush2.msra.mxu0 0.0
        %1133 = vmatprep.subr.mxu0 0.0
        %1134 = vmatpush2.msra.mxu0 0.0
        %1135 = vmatprep.subr.mxu0 0.0
        %1136 = vmatpush2.msra.mxu0 0.0
        %1137 = vmatprep.subr.mxu0 0.0
        %1138 = vmatpush2.msra.mxu0 0.0
        %1139 = vmatprep.subr.mxu0 0.0
        %1140 = vmatpush2.msra.mxu0 0.0
        %1141 = vmatprep.subr.mxu0 0.0
        %1142 = vmatpush2.msra.mxu0 0.0
        %1143 = vmatprep.subr.mxu0 0.0
        %1144 = vmatpush2.msra.mxu0 0.0
        %1145 = vmatprep.subr.mxu0 0.0
        %1146 = vmatpush2.msra.mxu0 0.0
        %1147 = vmatprep.mubr.f32.mxu0 0.0
        %1148 = vmatmul.mubr.f32.gmra.mxu0 %v1081
        %v1149 = vpop.f32.mrf.mxu0
        %v1150 = vadd.f32 0.0, %v1149
        %v1151 = vpop.f32.mrf.mxu0
        %1152 = vdwg.mxu0
        %v1153 = vadd.f32 %v1075, %v1150
        %v1154 = vtanh.pop %v1153
        %1155 = vst.msk [vmem:[#allocation3 + $0x5] sm:$0x1] %vm718, %v1154
        %1156 = vst.msk [vmem:[%s629 + $0x4] sm:$0x2] %vm720, %v1154
        %v1157 = vld [vmem:[#allocation3 + $0x6] sm:$0x1]
        %v1158 = vld [vmem:[%s629 + $0x6] sm:$0x1]
        %v1160 = vrot.slane %v1158, 7
        %v1162 = vsel %vm637, %v1157, %v1160
        %v1163 = vld [vmem:[%s4] sm:$0xff]
        %v1164 = vld [vmem:[%s4 + $0x8] sm:$0xff]
        %v1165 = vld [vmem:[%s4 + $0x10] sm:$0xff]
        %v1166 = vld [vmem:[%s4 + $0x18] sm:$0xff]
        %v1168 = vsel %vm515, %v1154, 0
        %1170 = vmatprep.subr.mxu0 0.0
        %1171 = vmatpush1.msra.mxu0 0.0
        %1172 = vmatprep.subr.mxu0 0.0
        %1173 = vmatpush1.msra.mxu0 0.0
        %1174 = vmatprep.subr.mxu0 0.0
        %1175 = vmatpush1.msra.mxu0 0.0
        %1176 = vmatprep.subr.mxu0 0.0
        %1177 = vmatpush1.msra.mxu0 0.0
        %1178 = vmatprep.subr.mxu0 0.0
        %1179 = vmatpush1.msra.mxu0 0.0
        %1180 = vmatprep.subr.mxu0 0.0
        %1181 = vmatpush1.msra.mxu0 0.0
        %1182 = vmatprep.subr.mxu0 0.0
        %1183 = vmatpush1.msra.mxu0 0.0
        %1184 = vmatprep.subr.mxu0 0.0
        %1185 = vmatpush1.msra.mxu0 0.0
        %1186 = vmatprep.subr.mxu0 0.0
        %1187 = vmatpush1.msra.mxu0 0.0
        %1188 = vmatprep.subr.mxu0 0.0
        %1189 = vmatpush1.msra.mxu0 0.0
        %1190 = vmatprep.subr.mxu0 0.0
        %1191 = vmatpush1.msra.mxu0 0.0
        %1192 = vmatprep.subr.mxu0 0.0
        %1193 = vmatpush1.msra.mxu0 0.0
        %1194 = vmatprep.subr.mxu0 0.0
        %1195 = vmatpush1.msra.mxu0 %v1166
        %1196 = vmatprep.subr.mxu0 0.0
        %1197 = vmatpush1.msra.mxu0 %v1165
        %1198 = vmatprep.subr.mxu0 0.0
        %1199 = vmatpush1.msra.mxu0 %v1164
        %1200 = vmatprep.subr.mxu0 0.0
        %1201 = vmatpush1.msra.mxu0 %v1163
        %1202 = vmatprep.subr.mxu0 0.0
        %1203 = vmatpush2.msra.mxu0 0.0
        %1204 = vmatprep.subr.mxu0 0.0
        %1205 = vmatpush2.msra.mxu0 0.0
        %1206 = vmatprep.subr.mxu0 0.0
        %1207 = vmatpush2.msra.mxu0 0.0
        %1208 = vmatprep.subr.mxu0 0.0
        %1209 = vmatpush2.msra.mxu0 0.0
        %1210 = vmatprep.subr.mxu0 0.0
        %1211 = vmatpush2.msra.mxu0 0.0
        %1212 = vmatprep.subr.mxu0 0.0
        %1213 = vmatpush2.msra.mxu0 0.0
        %1214 = vmatprep.subr.mxu0 0.0
        %1215 = vmatpush2.msra.mxu0 0.0
        %1216 = vmatprep.subr.mxu0 0.0
        %1217 = vmatpush2.msra.mxu0 0.0
        %1218 = vmatprep.subr.mxu0 0.0
        %1219 = vmatpush2.msra.mxu0 0.0
        %1220 = vmatprep.subr.mxu0 0.0
        %1221 = vmatpush2.msra.mxu0 0.0
        %1222 = vmatprep.subr.mxu0 0.0
        %1223 = vmatpush2.msra.mxu0 0.0
        %1224 = vmatprep.subr.mxu0 0.0
        %1225 = vmatpush2.msra.mxu0 0.0
        %1226 = vmatprep.subr.mxu0 0.0
        %1227 = vmatpush2.msra.mxu0 0.0
        %1228 = vmatprep.subr.mxu0 0.0
        %1229 = vmatpush2.msra.mxu0 0.0
        %1230 = vmatprep.subr.mxu0 0.0
        %1231 = vmatpush2.msra.mxu0 0.0
        %1232 = vmatprep.subr.mxu0 0.0
        %1233 = vmatpush2.msra.mxu0 0.0
        %1234 = vmatprep.mubr.f32.mxu0 0.0
        %1235 = vmatmul.mubr.f32.gmra.mxu0 %v1168
        %v1236 = vpop.f32.mrf.mxu0
        %v1237 = vadd.f32 0.0, %v1236
        %v1238 = vpop.f32.mrf.mxu0
        %1239 = vdwg.mxu0
        %v1240 = vadd.f32 %v1162, %v1237
        %v1241 = vtanh.pop %v1240
        %1242 = vst.msk [vmem:[#allocation3 + $0x6] sm:$0x1] %vm718, %v1241
        %1243 = vst.msk [vmem:[%s629 + $0x5] sm:$0x2] %vm720, %v1241
        %v1244 = vld [vmem:[#allocation3 + $0x7] sm:$0x1]
        %v1245 = vld [vmem:[%s629 + $0x7] sm:$0x1]
        %v1247 = vrot.slane %v1245, 7
        %v1249 = vsel %vm637, %v1244, %v1247
        %v1250 = vld [vmem:[%s4] sm:$0xff]
        %v1251 = vld [vmem:[%s4 + $0x8] sm:$0xff]
        %v1252 = vld [vmem:[%s4 + $0x10] sm:$0xff]
        %v1253 = vld [vmem:[%s4 + $0x18] sm:$0xff]
        %v1255 = vsel %vm515, %v1241, 0
        %1257 = vmatprep.subr.mxu0 0.0
        %1258 = vmatpush1.msra.mxu0 0.0
        %1259 = vmatprep.subr.mxu0 0.0
        %1260 = vmatpush1.msra.mxu0 0.0
        %1261 = vmatprep.subr.mxu0 0.0
        %1262 = vmatpush1.msra.mxu0 0.0
        %1263 = vmatprep.subr.mxu0 0.0
        %1264 = vmatpush1.msra.mxu0 0.0
        %1265 = vmatprep.subr.mxu0 0.0
        %1266 = vmatpush1.msra.mxu0 0.0
        %1267 = vmatprep.subr.mxu0 0.0
        %1268 = vmatpush1.msra.mxu0 0.0
        %1269 = vmatprep.subr.mxu0 0.0
        %1270 = vmatpush1.msra.mxu0 0.0
        %1271 = vmatprep.subr.mxu0 0.0
        %1272 = vmatpush1.msra.mxu0 0.0
        %1273 = vmatprep.subr.mxu0 0.0
        %1274 = vmatpush1.msra.mxu0 0.0
        %1275 = vmatprep.subr.mxu0 0.0
        %1276 = vmatpush1.msra.mxu0 0.0
        %1277 = vmatprep.subr.mxu0 0.0
        %1278 = vmatpush1.msra.mxu0 0.0
        %1279 = vmatprep.subr.mxu0 0.0
        %1280 = vmatpush1.msra.mxu0 0.0
        %1281 = vmatprep.subr.mxu0 0.0
        %1282 = vmatpush1.msra.mxu0 %v1253
        %1283 = vmatprep.subr.mxu0 0.0
        %1284 = vmatpush1.msra.mxu0 %v1252
        %1285 = vmatprep.subr.mxu0 0.0
        %1286 = vmatpush1.msra.mxu0 %v1251
        %1287 = vmatprep.subr.mxu0 0.0
        %1288 = vmatpush1.msra.mxu0 %v1250
        %1289 = vmatprep.subr.mxu0 0.0
        %1290 = vmatpush2.msra.mxu0 0.0
        %1291 = vmatprep.subr.mxu0 0.0
        %1292 = vmatpush2.msra.mxu0 0.0
        %1293 = vmatprep.subr.mxu0 0.0
        %1294 = vmatpush2.msra.mxu0 0.0
        %1295 = vmatprep.subr.mxu0 0.0
        %1296 = vmatpush2.msra.mxu0 0.0
        %1297 = vmatprep.subr.mxu0 0.0
        %1298 = vmatpush2.msra.mxu0 0.0
        %1299 = vmatprep.subr.mxu0 0.0
        %1300 = vmatpush2.msra.mxu0 0.0
        %1301 = vmatprep.subr.mxu0 0.0
        %1302 = vmatpush2.msra.mxu0 0.0
        %1303 = vmatprep.subr.mxu0 0.0
        %1304 = vmatpush2.msra.mxu0 0.0
        %1305 = vmatprep.subr.mxu0 0.0
        %1306 = vmatpush2.msra.mxu0 0.0
        %1307 = vmatprep.subr.mxu0 0.0
        %1308 = vmatpush2.msra.mxu0 0.0
        %1309 = vmatprep.subr.mxu0 0.0
        %1310 = vmatpush2.msra.mxu0 0.0
        %1311 = vmatprep.subr.mxu0 0.0
        %1312 = vmatpush2.msra.mxu0 0.0
        %1313 = vmatprep.subr.mxu0 0.0
        %1314 = vmatpush2.msra.mxu0 0.0
        %1315 = vmatprep.subr.mxu0 0.0
        %1316 = vmatpush2.msra.mxu0 0.0
        %1317 = vmatprep.subr.mxu0 0.0
        %1318 = vmatpush2.msra.mxu0 0.0
        %1319 = vmatprep.subr.mxu0 0.0
        %1320 = vmatpush2.msra.mxu0 0.0
        %1321 = vmatprep.mubr.f32.mxu0 0.0
        %1322 = vmatmul.mubr.f32.gmra.mxu0 %v1255
        %v1323 = vpop.f32.mrf.mxu0
        %v1324 = vadd.f32 0.0, %v1323
        %v1325 = vpop.f32.mrf.mxu0
        %1326 = vdwg.mxu0
        %v1327 = vadd.f32 %v1249, %v1324
        %v1328 = vtanh.pop %v1327
        %1329 = vst.msk [vmem:[#allocation3 + $0x7] sm:$0x1] %vm718, %v1328
        %1330 = vst.msk [vmem:[%s629 + $0x6] sm:$0x2] %vm720, %v1328
        %vm1331 = vcmask 254976
        %1332 = vst.msk [vmem:[#allocation2] sm:$0x3] %vm1331, %v1328
        %v1333 = vld [vmem:[#allocation3] sm:$0xff]
        %v1334 = vld [vmem:[%s5] sm:$0xff]
        %v1335 = vld [vmem:[%s5 + $0x8] sm:$0xff]
        %v1336 = vld [vmem:[%s5 + $0x10] sm:$0xff]
        %v1337 = vld [vmem:[%s5 + $0x18] sm:$0xff]
        %v1338 = vld [vmem:[%s5 + $0x20] sm:$0xff]
        %v1339 = vld [vmem:[%s5 + $0x28] sm:$0xff]
        %v1340 = vld [vmem:[%s5 + $0x30] sm:$0xff]
        %v1341 = vld [vmem:[%s5 + $0x38] sm:$0xff]
        %v1343 = vsel %vm515, %v1333, 0
        %1345 = vmatprep.subr.mxu0 0.0
        %1346 = vmatpush1.msra.mxu0 0.0
        %1347 = vmatprep.subr.mxu0 0.0
        %1348 = vmatpush1.msra.mxu0 0.0
        %1349 = vmatprep.subr.mxu0 0.0
        %1350 = vmatpush1.msra.mxu0 0.0
        %1351 = vmatprep.subr.mxu0 0.0
        %1352 = vmatpush1.msra.mxu0 0.0
        %1353 = vmatprep.subr.mxu0 0.0
        %1354 = vmatpush1.msra.mxu0 0.0
        %1355 = vmatprep.subr.mxu0 0.0
        %1356 = vmatpush1.msra.mxu0 0.0
        %1357 = vmatprep.subr.mxu0 0.0
        %1358 = vmatpush1.msra.mxu0 0.0
        %1359 = vmatprep.subr.mxu0 0.0
        %1360 = vmatpush1.msra.mxu0 0.0
        %1361 = vmatprep.subr.mxu0 0.0
        %1362 = vmatpush1.msra.mxu0 0.0
        %1363 = vmatprep.subr.mxu0 0.0
        %1364 = vmatpush1.msra.mxu0 0.0
        %1365 = vmatprep.subr.mxu0 0.0
        %1366 = vmatpush1.msra.mxu0 0.0
        %1367 = vmatprep.subr.mxu0 0.0
        %1368 = vmatpush1.msra.mxu0 0.0
        %1369 = vmatprep.subr.mxu0 %v1341
        %1370 = vmatpush1.msra.mxu0 %v1340
        %1371 = vmatprep.subr.mxu0 %v1339
        %1372 = vmatpush1.msra.mxu0 %v1338
        %1373 = vmatprep.subr.mxu0 %v1337
        %1374 = vmatpush1.msra.mxu0 %v1336
        %1375 = vmatprep.subr.mxu0 %v1335
        %1376 = vmatpush1.msra.mxu0 %v1334
        %1377 = vmatprep.subr.mxu0 0.0
        %1378 = vmatpush2.msra.mxu0 0.0
        %1379 = vmatprep.subr.mxu0 0.0
        %1380 = vmatpush2.msra.mxu0 0.0
        %1381 = vmatprep.subr.mxu0 0.0
        %1382 = vmatpush2.msra.mxu0 0.0
        %1383 = vmatprep.subr.mxu0 0.0
        %1384 = vmatpush2.msra.mxu0 0.0
        %1385 = vmatprep.subr.mxu0 0.0
        %1386 = vmatpush2.msra.mxu0 0.0
        %1387 = vmatprep.subr.mxu0 0.0
        %1388 = vmatpush2.msra.mxu0 0.0
        %1389 = vmatprep.subr.mxu0 0.0
        %1390 = vmatpush2.msra.mxu0 0.0
        %1391 = vmatprep.subr.mxu0 0.0
        %1392 = vmatpush2.msra.mxu0 0.0
        %1393 = vmatprep.subr.mxu0 0.0
        %1394 = vmatpush2.msra.mxu0 0.0
        %1395 = vmatprep.subr.mxu0 0.0
        %1396 = vmatpush2.msra.mxu0 0.0
        %1397 = vmatprep.subr.mxu0 0.0
        %1398 = vmatpush2.msra.mxu0 0.0
        %1399 = vmatprep.subr.mxu0 0.0
        %1400 = vmatpush2.msra.mxu0 0.0
        %1401 = vmatprep.subr.mxu0 0.0
        %1402 = vmatpush2.msra.mxu0 0.0
        %1403 = vmatprep.subr.mxu0 0.0
        %1404 = vmatpush2.msra.mxu0 0.0
        %1405 = vmatprep.subr.mxu0 0.0
        %1406 = vmatpush2.msra.mxu0 0.0
        %1407 = vmatprep.subr.mxu0 0.0
        %1408 = vmatpush2.msra.mxu0 0.0
        %1409 = vmatprep.mubr.f32.mxu0 0.0
        %1410 = vmatmul.mubr.f32.gmra.mxu0 %v1343
        %v1411 = vpop.f32.mrf.mxu0
        %v1412 = vadd.f32 0.0, %v1411
        %v1413 = vpop.f32.mrf.mxu0
        %v1414 = vadd.f32 0.0, %v1413
        %1415 = vdwg.mxu0
        %v1416 = vxor.u32 %v1412, 2147483648
        %v1417 = vxor.u32 %v1414, 2147483648
        %v1418 = vmul.f32 %v1416, 1.442695
        %v1419 = vpow.pop %v1418
        %v1420 = vmul.f32 %v1417, 1.442695
        %v1421 = vpow.pop %v1420
        %v1422 = vadd.f32 %v1419, 1.0
        %v1423 = vadd.f32 %v1421, 1.0
        %v1424 = vrcp.pop %v1422
        %v1425 = vmul.f32 1.0, %v1424
        %v1426 = vrcp.pop %v1423
        %v1427 = vmul.f32 1.0, %v1426
        %1428 = vst [vmem:[%s389] sm:$0xff] %v1425
        %1429 = vst [vmem:[%s389 + $0x8] sm:$0xff] %v1427
        %v1430 = vld [vmem:[#allocation5] sm:$0xff]
        %v1431 = vld [vmem:[#allocation5 + $0x8] sm:$0xff]
        %v1432 = vld [vmem:[#allocation5 + $0x10] sm:$0xff]
        %v1433 = vld [vmem:[#allocation5 + $0x18] sm:$0xff]
        %v1434 = vld [vmem:[#allocation5 + $0x20] sm:$0xff]
        %v1435 = vld [vmem:[#allocation5 + $0x28] sm:$0xff]
        %v1436 = vld [vmem:[#allocation5 + $0x30] sm:$0xff]
        %v1437 = vld [vmem:[#allocation5 + $0x38] sm:$0xff]
        %v1438 = vld [vmem:[#allocation5 + $0x40] sm:$0xff]
        %v1439 = vld [vmem:[#allocation5 + $0x48] sm:$0xff]
        %v1440 = vld [vmem:[#allocation5 + $0x50] sm:$0xff]
        %v1441 = vld [vmem:[#allocation5 + $0x58] sm:$0xff]
        %v1442 = vld [vmem:[#allocation5 + $0x60] sm:$0xff]
        %v1443 = vld [vmem:[#allocation5 + $0x68] sm:$0xff]
        %v1444 = vld [vmem:[#allocation5 + $0x70] sm:$0xff]
        %v1445 = vld [vmem:[#allocation5 + $0x78] sm:$0xff]
        %v1446 = vld [vmem:[#allocation5 + $0x80] sm:$0xff]
        %v1447 = vld [vmem:[#allocation5 + $0x88] sm:$0xff]
        %v1448 = vld [vmem:[#allocation5 + $0x90] sm:$0xff]
        %v1449 = vld [vmem:[#allocation5 + $0x98] sm:$0xff]
        %v1450 = vld [vmem:[#allocation5 + $0xa0] sm:$0xff]
        %v1451 = vld [vmem:[#allocation5 + $0xa8] sm:$0xff]
        %v1452 = vld [vmem:[#allocation5 + $0xb0] sm:$0xff]
        %v1453 = vld [vmem:[#allocation5 + $0xb8] sm:$0xff]
        %v1454 = vld [vmem:[#allocation5 + $0xc0] sm:$0xff]
        %v1455 = vld [vmem:[#allocation5 + $0xc8] sm:$0xff]
        %v1456 = vld [vmem:[#allocation5 + $0xd0] sm:$0xff]
        %v1457 = vld [vmem:[#allocation5 + $0xd8] sm:$0xff]
        %v1458 = vld [vmem:[#allocation5 + $0xe0] sm:$0xff]
        %v1459 = vld [vmem:[#allocation5 + $0xe8] sm:$0xff]
        %v1460 = vld [vmem:[#allocation5 + $0xf0] sm:$0xff]
        %v1461 = vld [vmem:[#allocation5 + $0xf8] sm:$0xff]
        %v1462 = vld [vmem:[#allocation5 + $0x100] sm:$0xff]
        %v1463 = vld [vmem:[#allocation5 + $0x108] sm:$0xff]
        %v1464 = vld [vmem:[#allocation5 + $0x110] sm:$0xff]
        %v1465 = vld [vmem:[#allocation5 + $0x118] sm:$0xff]
        %v1466 = vld [vmem:[#allocation5 + $0x120] sm:$0xff]
        %v1467 = vld [vmem:[#allocation5 + $0x128] sm:$0xff]
        %v1468 = vld [vmem:[#allocation5 + $0x130] sm:$0xff]
        %v1469 = vld [vmem:[#allocation5 + $0x138] sm:$0xff]
        %v1470 = vld [vmem:[#allocation5 + $0x140] sm:$0xff]
        %v1471 = vld [vmem:[#allocation5 + $0x148] sm:$0xff]
        %v1472 = vld [vmem:[#allocation5 + $0x150] sm:$0xff]
        %v1473 = vld [vmem:[#allocation5 + $0x158] sm:$0xff]
        %v1474 = vld [vmem:[#allocation5 + $0x160] sm:$0xff]
        %v1475 = vld [vmem:[#allocation5 + $0x168] sm:$0xff]
        %v1476 = vld [vmem:[#allocation5 + $0x170] sm:$0xff]
        %v1477 = vld [vmem:[#allocation5 + $0x178] sm:$0xff]
        %v1478 = vld [vmem:[#allocation5 + $0x180] sm:$0xff]
        %v1479 = vld [vmem:[#allocation5 + $0x188] sm:$0xff]
        %v1480 = vld [vmem:[#allocation5 + $0x190] sm:$0xff]
        %v1481 = vld [vmem:[#allocation5 + $0x198] sm:$0xff]
        %v1482 = vld [vmem:[#allocation5 + $0x1a0] sm:$0xff]
        %v1483 = vld [vmem:[#allocation5 + $0x1a8] sm:$0xff]
        %v1484 = vld [vmem:[#allocation5 + $0x1b0] sm:$0xff]
        %v1485 = vld [vmem:[#allocation5 + $0x1b8] sm:$0xff]
        %v1486 = vld [vmem:[#allocation5 + $0x1c0] sm:$0xff]
        %v1487 = vld [vmem:[#allocation5 + $0x1c8] sm:$0xff]
        %v1488 = vld [vmem:[#allocation5 + $0x1d0] sm:$0xff]
        %v1489 = vld [vmem:[#allocation5 + $0x1d8] sm:$0xff]
        %v1490 = vld [vmem:[#allocation5 + $0x1e0] sm:$0xff]
        %v1491 = vld [vmem:[#allocation5 + $0x1e8] sm:$0xff]
        %v1492 = vld [vmem:[#allocation5 + $0x1f0] sm:$0xff]
        %v1493 = vld [vmem:[#allocation5 + $0x1f8] sm:$0xff]
        %1494 = vmatprep.subr.mxu0 %v1461
        %1495 = vmatpush1.msra.mxu0 %v1460
        %1496 = vmatprep.subr.mxu0 %v1459
        %1497 = vmatpush1.msra.mxu0 %v1458
        %1498 = vmatprep.subr.mxu0 %v1457
        %1499 = vmatpush1.msra.mxu0 %v1456
        %1500 = vmatprep.subr.mxu0 %v1455
        %1501 = vmatpush1.msra.mxu0 %v1454
        %1502 = vmatprep.subr.mxu0 %v1453
        %1503 = vmatpush1.msra.mxu0 %v1452
        %1504 = vmatprep.subr.mxu0 %v1451
        %1505 = vmatpush1.msra.mxu0 %v1450
        %1506 = vmatprep.subr.mxu0 %v1449
        %1507 = vmatpush1.msra.mxu0 %v1448
        %1508 = vmatprep.subr.mxu0 %v1447
        %1509 = vmatpush1.msra.mxu0 %v1446
        %1510 = vmatprep.subr.mxu0 %v1445
        %1511 = vmatpush1.msra.mxu0 %v1444
        %1512 = vmatprep.subr.mxu0 %v1443
        %1513 = vmatpush1.msra.mxu0 %v1442
        %1514 = vmatprep.subr.mxu0 %v1441
        %1515 = vmatpush1.msra.mxu0 %v1440
        %1516 = vmatprep.subr.mxu0 %v1439
        %1517 = vmatpush1.msra.mxu0 %v1438
        %1518 = vmatprep.subr.mxu0 %v1437
        %1519 = vmatpush1.msra.mxu0 %v1436
        %1520 = vmatprep.subr.mxu0 %v1435
        %1521 = vmatpush1.msra.mxu0 %v1434
        %1522 = vmatprep.subr.mxu0 %v1433
        %1523 = vmatpush1.msra.mxu0 %v1432
        %1524 = vmatprep.subr.mxu0 %v1431
        %1525 = vmatpush1.msra.mxu0 %v1430
        %1526 = vmatprep.subr.mxu0 %v1493
        %1527 = vmatpush2.msra.mxu0 %v1492
        %1528 = vmatprep.subr.mxu0 %v1491
        %1529 = vmatpush2.msra.mxu0 %v1490
        %1530 = vmatprep.subr.mxu0 %v1489
        %1531 = vmatpush2.msra.mxu0 %v1488
        %1532 = vmatprep.subr.mxu0 %v1487
        %1533 = vmatpush2.msra.mxu0 %v1486
        %1534 = vmatprep.subr.mxu0 %v1485
        %1535 = vmatpush2.msra.mxu0 %v1484
        %1536 = vmatprep.subr.mxu0 %v1483
        %1537 = vmatpush2.msra.mxu0 %v1482
        %1538 = vmatprep.subr.mxu0 %v1481
        %1539 = vmatpush2.msra.mxu0 %v1480
        %1540 = vmatprep.subr.mxu0 %v1479
        %1541 = vmatpush2.msra.mxu0 %v1478
        %1542 = vmatprep.subr.mxu0 %v1477
        %1543 = vmatpush2.msra.mxu0 %v1476
        %1544 = vmatprep.subr.mxu0 %v1475
        %1545 = vmatpush2.msra.mxu0 %v1474
        %1546 = vmatprep.subr.mxu0 %v1473
        %1547 = vmatpush2.msra.mxu0 %v1472
        %1548 = vmatprep.subr.mxu0 %v1471
        %1549 = vmatpush2.msra.mxu0 %v1470
        %1550 = vmatprep.subr.mxu0 %v1469
        %1551 = vmatpush2.msra.mxu0 %v1468
        %1552 = vmatprep.subr.mxu0 %v1467
        %1553 = vmatpush2.msra.mxu0 %v1466
        %1554 = vmatprep.subr.mxu0 %v1465
        %1555 = vmatpush2.msra.mxu0 %v1464
        %1556 = vmatprep.subr.mxu0 %v1463
        %1557 = vmatpush2.msra.mxu0 %v1462
        %1558 = vmatprep.mubr.f32.mxu0 %v1427
        %1559 = vmatmul.mubr.f32.gmra.mxu0 %v1425
        %v1560 = vpop.f32.mrf.mxu0
        %v1561 = vadd.f32 0.0, %v1560
        %v1562 = vpop.f32.mrf.mxu0
        %v1563 = vadd.f32 0.0, %v1562
        %1564 = vdwg.mxu0
        %1565 = vst [vmem:[%s382] sm:$0xff] %v1561
        %1566 = vst [vmem:[%s382 + $0x8] sm:$0xff] %v1563
        %v1567 = vld [vmem:[%s629] sm:$0xff]
        %v1568 = vld [vmem:[%s5] sm:$0xff]
        %v1569 = vld [vmem:[%s5 + $0x8] sm:$0xff]
        %v1570 = vld [vmem:[%s5 + $0x10] sm:$0xff]
        %v1571 = vld [vmem:[%s5 + $0x18] sm:$0xff]
        %v1572 = vld [vmem:[%s5 + $0x20] sm:$0xff]
        %v1573 = vld [vmem:[%s5 + $0x28] sm:$0xff]
        %v1574 = vld [vmem:[%s5 + $0x30] sm:$0xff]
        %v1575 = vld [vmem:[%s5 + $0x38] sm:$0xff]
        %v1577 = vsel %vm515, %v1567, 0
        %1579 = vmatprep.subr.mxu0 0.0
        %1580 = vmatpush1.msra.mxu0 0.0
        %1581 = vmatprep.subr.mxu0 0.0
        %1582 = vmatpush1.msra.mxu0 0.0
        %1583 = vmatprep.subr.mxu0 0.0
        %1584 = vmatpush1.msra.mxu0 0.0
        %1585 = vmatprep.subr.mxu0 0.0
        %1586 = vmatpush1.msra.mxu0 0.0
        %1587 = vmatprep.subr.mxu0 0.0
        %1588 = vmatpush1.msra.mxu0 0.0
        %1589 = vmatprep.subr.mxu0 0.0
        %1590 = vmatpush1.msra.mxu0 0.0
        %1591 = vmatprep.subr.mxu0 0.0
        %1592 = vmatpush1.msra.mxu0 0.0
        %1593 = vmatprep.subr.mxu0 0.0
        %1594 = vmatpush1.msra.mxu0 0.0
        %1595 = vmatprep.subr.mxu0 0.0
        %1596 = vmatpush1.msra.mxu0 0.0
        %1597 = vmatprep.subr.mxu0 0.0
        %1598 = vmatpush1.msra.mxu0 0.0
        %1599 = vmatprep.subr.mxu0 0.0
        %1600 = vmatpush1.msra.mxu0 0.0
        %1601 = vmatprep.subr.mxu0 0.0
        %1602 = vmatpush1.msra.mxu0 0.0
        %1603 = vmatprep.subr.mxu0 %v1575
        %1604 = vmatpush1.msra.mxu0 %v1574
        %1605 = vmatprep.subr.mxu0 %v1573
        %1606 = vmatpush1.msra.mxu0 %v1572
        %1607 = vmatprep.subr.mxu0 %v1571
        %1608 = vmatpush1.msra.mxu0 %v1570
        %1609 = vmatprep.subr.mxu0 %v1569
        %1610 = vmatpush1.msra.mxu0 %v1568
        %1611 = vmatprep.subr.mxu0 0.0
        %1612 = vmatpush2.msra.mxu0 0.0
        %1613 = vmatprep.subr.mxu0 0.0
        %1614 = vmatpush2.msra.mxu0 0.0
        %1615 = vmatprep.subr.mxu0 0.0
        %1616 = vmatpush2.msra.mxu0 0.0
        %1617 = vmatprep.subr.mxu0 0.0
        %1618 = vmatpush2.msra.mxu0 0.0
        %1619 = vmatprep.subr.mxu0 0.0
        %1620 = vmatpush2.msra.mxu0 0.0
        %1621 = vmatprep.subr.mxu0 0.0
        %1622 = vmatpush2.msra.mxu0 0.0
        %1623 = vmatprep.subr.mxu0 0.0
        %1624 = vmatpush2.msra.mxu0 0.0
        %1625 = vmatprep.subr.mxu0 0.0
        %1626 = vmatpush2.msra.mxu0 0.0
        %1627 = vmatprep.subr.mxu0 0.0
        %1628 = vmatpush2.msra.mxu0 0.0
        %1629 = vmatprep.subr.mxu0 0.0
        %1630 = vmatpush2.msra.mxu0 0.0
        %1631 = vmatprep.subr.mxu0 0.0
        %1632 = vmatpush2.msra.mxu0 0.0
        %1633 = vmatprep.subr.mxu0 0.0
        %1634 = vmatpush2.msra.mxu0 0.0
        %1635 = vmatprep.subr.mxu0 0.0
        %1636 = vmatpush2.msra.mxu0 0.0
        %1637 = vmatprep.subr.mxu0 0.0
        %1638 = vmatpush2.msra.mxu0 0.0
        %1639 = vmatprep.subr.mxu0 0.0
        %1640 = vmatpush2.msra.mxu0 0.0
        %1641 = vmatprep.subr.mxu0 0.0
        %1642 = vmatpush2.msra.mxu0 0.0
        %1643 = vmatprep.mubr.f32.mxu0 0.0
        %1644 = vmatmul.mubr.f32.gmra.mxu0 %v1577
        %v1645 = vpop.f32.mrf.mxu0
        %v1646 = vadd.f32 0.0, %v1645
        %v1647 = vpop.f32.mrf.mxu0
        %v1648 = vadd.f32 0.0, %v1647
        %1649 = vdwg.mxu0
        %v1650 = vxor.u32 %v1646, 2147483648
        %v1651 = vxor.u32 %v1648, 2147483648
        %v1652 = vmul.f32 %v1650, 1.442695
        %v1653 = vpow.pop %v1652
        %v1654 = vmul.f32 %v1651, 1.442695
        %v1655 = vpow.pop %v1654
        %v1656 = vadd.f32 %v1653, 1.0
        %v1657 = vadd.f32 %v1655, 1.0
        %v1658 = vrcp.pop %v1656
        %v1659 = vmul.f32 1.0, %v1658
        %v1660 = vrcp.pop %v1657
        %v1661 = vmul.f32 1.0, %v1660
        %s1662 = scalar_lea.vmem %s389, 16 [#allocation9]
        %1663 = vst [vmem:[%s1662] sm:$0xff] %v1659
        %1664 = vst [vmem:[%s1662 + $0x8] sm:$0xff] %v1661
        %v1665 = vld [vmem:[#allocation5] sm:$0xff]
        %v1666 = vld [vmem:[#allocation5 + $0x8] sm:$0xff]
        %v1667 = vld [vmem:[#allocation5 + $0x10] sm:$0xff]
        %v1668 = vld [vmem:[#allocation5 + $0x18] sm:$0xff]
        %v1669 = vld [vmem:[#allocation5 + $0x20] sm:$0xff]
        %v1670 = vld [vmem:[#allocation5 + $0x28] sm:$0xff]
        %v1671 = vld [vmem:[#allocation5 + $0x30] sm:$0xff]
        %v1672 = vld [vmem:[#allocation5 + $0x38] sm:$0xff]
        %v1673 = vld [vmem:[#allocation5 + $0x40] sm:$0xff]
        %v1674 = vld [vmem:[#allocation5 + $0x48] sm:$0xff]
        %v1675 = vld [vmem:[#allocation5 + $0x50] sm:$0xff]
        %v1676 = vld [vmem:[#allocation5 + $0x58] sm:$0xff]
        %v1677 = vld [vmem:[#allocation5 + $0x60] sm:$0xff]
        %v1678 = vld [vmem:[#allocation5 + $0x68] sm:$0xff]
        %v1679 = vld [vmem:[#allocation5 + $0x70] sm:$0xff]
        %v1680 = vld [vmem:[#allocation5 + $0x78] sm:$0xff]
        %v1681 = vld [vmem:[#allocation5 + $0x80] sm:$0xff]
        %v1682 = vld [vmem:[#allocation5 + $0x88] sm:$0xff]
        %v1683 = vld [vmem:[#allocation5 + $0x90] sm:$0xff]
        %v1684 = vld [vmem:[#allocation5 + $0x98] sm:$0xff]
        %v1685 = vld [vmem:[#allocation5 + $0xa0] sm:$0xff]
        %v1686 = vld [vmem:[#allocation5 + $0xa8] sm:$0xff]
        %v1687 = vld [vmem:[#allocation5 + $0xb0] sm:$0xff]
        %v1688 = vld [vmem:[#allocation5 + $0xb8] sm:$0xff]
        %v1689 = vld [vmem:[#allocation5 + $0xc0] sm:$0xff]
        %v1690 = vld [vmem:[#allocation5 + $0xc8] sm:$0xff]
        %v1691 = vld [vmem:[#allocation5 + $0xd0] sm:$0xff]
        %v1692 = vld [vmem:[#allocation5 + $0xd8] sm:$0xff]
        %v1693 = vld [vmem:[#allocation5 + $0xe0] sm:$0xff]
        %v1694 = vld [vmem:[#allocation5 + $0xe8] sm:$0xff]
        %v1695 = vld [vmem:[#allocation5 + $0xf0] sm:$0xff]
        %v1696 = vld [vmem:[#allocation5 + $0xf8] sm:$0xff]
        %v1697 = vld [vmem:[#allocation5 + $0x100] sm:$0xff]
        %v1698 = vld [vmem:[#allocation5 + $0x108] sm:$0xff]
        %v1699 = vld [vmem:[#allocation5 + $0x110] sm:$0xff]
        %v1700 = vld [vmem:[#allocation5 + $0x118] sm:$0xff]
        %v1701 = vld [vmem:[#allocation5 + $0x120] sm:$0xff]
        %v1702 = vld [vmem:[#allocation5 + $0x128] sm:$0xff]
        %v1703 = vld [vmem:[#allocation5 + $0x130] sm:$0xff]
        %v1704 = vld [vmem:[#allocation5 + $0x138] sm:$0xff]
        %v1705 = vld [vmem:[#allocation5 + $0x140] sm:$0xff]
        %v1706 = vld [vmem:[#allocation5 + $0x148] sm:$0xff]
        %v1707 = vld [vmem:[#allocation5 + $0x150] sm:$0xff]
        %v1708 = vld [vmem:[#allocation5 + $0x158] sm:$0xff]
        %v1709 = vld [vmem:[#allocation5 + $0x160] sm:$0xff]
        %v1710 = vld [vmem:[#allocation5 + $0x168] sm:$0xff]
        %v1711 = vld [vmem:[#allocation5 + $0x170] sm:$0xff]
        %v1712 = vld [vmem:[#allocation5 + $0x178] sm:$0xff]
        %v1713 = vld [vmem:[#allocation5 + $0x180] sm:$0xff]
        %v1714 = vld [vmem:[#allocation5 + $0x188] sm:$0xff]
        %v1715 = vld [vmem:[#allocation5 + $0x190] sm:$0xff]
        %v1716 = vld [vmem:[#allocation5 + $0x198] sm:$0xff]
        %v1717 = vld [vmem:[#allocation5 + $0x1a0] sm:$0xff]
        %v1718 = vld [vmem:[#allocation5 + $0x1a8] sm:$0xff]
        %v1719 = vld [vmem:[#allocation5 + $0x1b0] sm:$0xff]
        %v1720 = vld [vmem:[#allocation5 + $0x1b8] sm:$0xff]
        %v1721 = vld [vmem:[#allocation5 + $0x1c0] sm:$0xff]
        %v1722 = vld [vmem:[#allocation5 + $0x1c8] sm:$0xff]
        %v1723 = vld [vmem:[#allocation5 + $0x1d0] sm:$0xff]
        %v1724 = vld [vmem:[#allocation5 + $0x1d8] sm:$0xff]
        %v1725 = vld [vmem:[#allocation5 + $0x1e0] sm:$0xff]
        %v1726 = vld [vmem:[#allocation5 + $0x1e8] sm:$0xff]
        %v1727 = vld [vmem:[#allocation5 + $0x1f0] sm:$0xff]
        %v1728 = vld [vmem:[#allocation5 + $0x1f8] sm:$0xff]
        %1729 = vmatprep.subr.mxu0 %v1696
        %1730 = vmatpush1.msra.mxu0 %v1695
        %1731 = vmatprep.subr.mxu0 %v1694
        %1732 = vmatpush1.msra.mxu0 %v1693
        %1733 = vmatprep.subr.mxu0 %v1692
        %1734 = vmatpush1.msra.mxu0 %v1691
        %1735 = vmatprep.subr.mxu0 %v1690
        %1736 = vmatpush1.msra.mxu0 %v1689
        %1737 = vmatprep.subr.mxu0 %v1688
        %1738 = vmatpush1.msra.mxu0 %v1687
        %1739 = vmatprep.subr.mxu0 %v1686
        %1740 = vmatpush1.msra.mxu0 %v1685
        %1741 = vmatprep.subr.mxu0 %v1684
        %1742 = vmatpush1.msra.mxu0 %v1683
        %1743 = vmatprep.subr.mxu0 %v1682
        %1744 = vmatpush1.msra.mxu0 %v1681
        %1745 = vmatprep.subr.mxu0 %v1680
        %1746 = vmatpush1.msra.mxu0 %v1679
        %1747 = vmatprep.subr.mxu0 %v1678
        %1748 = vmatpush1.msra.mxu0 %v1677
        %1749 = vmatprep.subr.mxu0 %v1676
        %1750 = vmatpush1.msra.mxu0 %v1675
        %1751 = vmatprep.subr.mxu0 %v1674
        %1752 = vmatpush1.msra.mxu0 %v1673
        %1753 = vmatprep.subr.mxu0 %v1672
        %1754 = vmatpush1.msra.mxu0 %v1671
        %1755 = vmatprep.subr.mxu0 %v1670
        %1756 = vmatpush1.msra.mxu0 %v1669
        %1757 = vmatprep.subr.mxu0 %v1668
        %1758 = vmatpush1.msra.mxu0 %v1667
        %1759 = vmatprep.subr.mxu0 %v1666
        %1760 = vmatpush1.msra.mxu0 %v1665
        %1761 = vmatprep.subr.mxu0 %v1728
        %1762 = vmatpush2.msra.mxu0 %v1727
        %1763 = vmatprep.subr.mxu0 %v1726
        %1764 = vmatpush2.msra.mxu0 %v1725
        %1765 = vmatprep.subr.mxu0 %v1724
        %1766 = vmatpush2.msra.mxu0 %v1723
        %1767 = vmatprep.subr.mxu0 %v1722
        %1768 = vmatpush2.msra.mxu0 %v1721
        %1769 = vmatprep.subr.mxu0 %v1720
        %1770 = vmatpush2.msra.mxu0 %v1719
        %1771 = vmatprep.subr.mxu0 %v1718
        %1772 = vmatpush2.msra.mxu0 %v1717
        %1773 = vmatprep.subr.mxu0 %v1716
        %1774 = vmatpush2.msra.mxu0 %v1715
        %1775 = vmatprep.subr.mxu0 %v1714
        %1776 = vmatpush2.msra.mxu0 %v1713
        %1777 = vmatprep.subr.mxu0 %v1712
        %1778 = vmatpush2.msra.mxu0 %v1711
        %1779 = vmatprep.subr.mxu0 %v1710
        %1780 = vmatpush2.msra.mxu0 %v1709
        %1781 = vmatprep.subr.mxu0 %v1708
        %1782 = vmatpush2.msra.mxu0 %v1707
        %1783 = vmatprep.subr.mxu0 %v1706
        %1784 = vmatpush2.msra.mxu0 %v1705
        %1785 = vmatprep.subr.mxu0 %v1704
        %1786 = vmatpush2.msra.mxu0 %v1703
        %1787 = vmatprep.subr.mxu0 %v1702
        %1788 = vmatpush2.msra.mxu0 %v1701
        %1789 = vmatprep.subr.mxu0 %v1700
        %1790 = vmatpush2.msra.mxu0 %v1699
        %1791 = vmatprep.subr.mxu0 %v1698
        %1792 = vmatpush2.msra.mxu0 %v1697
        %1793 = vmatprep.mubr.f32.mxu0 %v1661
        %1794 = vmatmul.mubr.f32.gmra.mxu0 %v1659
        %v1795 = vpop.f32.mrf.mxu0
        %v1796 = vadd.f32 0.0, %v1795
        %v1797 = vpop.f32.mrf.mxu0
        %v1798 = vadd.f32 0.0, %v1797
        %1799 = vdwg.mxu0
        %s1800 = scalar_lea.vmem %s382, 16 [#allocation8]
        %1801 = vst [vmem:[%s1800] sm:$0xff] %v1796
        %1802 = vst [vmem:[%s1800 + $0x8] sm:$0xff] %v1798
        %s1803 = sand.u32 %s208, 1
        %s1804 = scalar_lea.sflag [#allocation7], %s1803
        %s1805 = sand.u32 %s208, 1
        %s1806 = smul.addr %s1805, 32
        %s1807 = scalar_lea.vmem [#allocation8], %s1806
        %s1808 = sand.u32 %s236, 1
        %s1809 = scalar_lea.sflag [#allocation10], %s1808
        %s1810 = sand.u32 %s236, 1
        %s1811 = smul.addr %s1810, 32
        %s1812 = scalar_lea.vmem [#allocation9], %s1811
        // Predicated region
        $region80: #{tpu_custom_call.1} parent=66 // pred_check
          %p1813 = pneg %p218
        $region81: #{tpu_custom_call.1} parent=66 // pred_check_branch
          %1815 = sbr.rel (%p1813) target = $region83
        $region82: #{tpu_custom_call.1} parent=66 // pred_region
          %s1816 = smul.u32 2, %s31
          %s1818 = ssub.s32 512, 512
          %1819 = vsyncadd %s1804, %s1818
          %s1820 = smul.addr %s32, 2
          %s1821 = smul.addr %s1816, 4
          %s1822 = sadd.s32 %s1820, %s1821
          %s1823 = smul.addr %s1822, 128
          %s1824 = scalar_lea.hbm %s7, %s1823
          %s1825 = sshll.u32 %s1807, 4
          %s1826 = int_to_ptr.vmem [resolvable:$true] %s1825
          %1831 = dma.vmem_to_hbm [thread:$0]  %s1826, 512, %s1824, %s1804, 256, 512, 16
        $region83: #{tpu_custom_call.1} parent=66 // pred_fallthru
          _
        // Predicated region
        $region84: #{tpu_custom_call.1} parent=66 // pred_check
          %p1832 = pneg %p246
        $region85: #{tpu_custom_call.1} parent=66 // pred_check_branch
          %1834 = sbr.rel (%p1832) target = $region87
        $region86: #{tpu_custom_call.1} parent=66 // pred_region
          %s1835 = smul.u32 2, %s31
          %s1837 = ssub.s32 512, 512
          %1838 = vsyncadd %s1809, %s1837
          %s1839 = smul.addr %s32, 2
          %s1840 = smul.addr %s1835, 4
          %s1841 = sadd.s32 %s1839, %s1840
          %s1842 = smul.addr %s1841, 128
          %s1843 = scalar_lea.hbm %s8, %s1842
          %s1844 = sshll.u32 %s1812, 4
          %s1845 = int_to_ptr.vmem [resolvable:$true] %s1844
          %1850 = dma.vmem_to_hbm [thread:$0]  %s1845, 512, %s1843, %s1809, 256, 512, 16
        $region87: #{tpu_custom_call.1} parent=66 // pred_fallthru
          _
      $region67: #{tpu_custom_call.1} parent=5 // pred_fallthru
        _
      %p1851 = scmp.le.s32.totalorder 2, %s22
      // Predicated region
      $region88: #{tpu_custom_call.1} parent=5 // pred_check
        %p1852 = pneg %p1851
      $region89: #{tpu_custom_call.1} parent=5 // pred_check_branch
        %1854 = sbr.rel (%p1852) target = $region91
      $region90: #{tpu_custom_call.1} parent=5 // pred_region
        %s1855 = ssub.s32 %s22, 2
        // Predicated region
        $region92: #{tpu_custom_call.1} parent=90 // pred_check
          %p1856 = pneg %p224
        $region93: #{tpu_custom_call.1} parent=90 // pred_check_branch
          %1858 = sbr.rel (%p1856) target = $region95
        $region94: #{tpu_custom_call.1} parent=90 // pred_region
          %s1859 = sand.u32 %s209, 1
          %s1860 = scalar_lea.sflag [#allocation7], %s1859
          %s1861 = sand.u32 %s209, 1
          %s1862 = smul.addr %s1861, 32
          %s1863 = scalar_lea.vmem [#allocation8], %s1862
          %1864 = dma.done %s1860, 512
        $region95: #{tpu_custom_call.1} parent=90 // pred_fallthru
          _
        // Predicated region
        $region96: #{tpu_custom_call.1} parent=90 // pred_check
          %p1865 = pneg %p252
        $region97: #{tpu_custom_call.1} parent=90 // pred_check_branch
          %1867 = sbr.rel (%p1865) target = $region99
        $region98: #{tpu_custom_call.1} parent=90 // pred_region
          %s1868 = sand.u32 %s237, 1
          %s1869 = scalar_lea.sflag [#allocation10], %s1868
          %s1870 = sand.u32 %s237, 1
          %s1871 = smul.addr %s1870, 32
          %s1872 = scalar_lea.vmem [#allocation9], %s1871
          %1873 = dma.done %s1869, 512
        $region99: #{tpu_custom_call.1} parent=90 // pred_fallthru
          _
      $region91: #{tpu_custom_call.1} parent=5 // pred_fallthru
        _
    $region6: #{tpu_custom_call.1} parent=1 // loop_footer
      %s26 = sadd.s32 1, %s22
    $region7: #{tpu_custom_call.1} parent=1 // loop_footer_branch
      %21 = sbr.rel target = $region3
    $region8: #{tpu_custom_call.1} parent=1 // loop_exit
      _
    %1874 = vsyncpa [#allocation6], 1
    %s1875 = scalar_lea.sflag [#allocation6], 1
    %1876 = vsyncpa %s1875, 1
    %1877 = vsyncpa [#allocation7], 1
    %s1878 = scalar_lea.sflag [#allocation7], 1
    %1879 = vsyncpa %s1878, 1
    %1880 = vsyncpa [#allocation10], 1
    %s1881 = scalar_lea.sflag [#allocation10], 1
    %1882 = vsyncpa %s1881, 1

</llo_original>
